<compile_context>
chip_gen: v7x
topology: tpu7x:2x2x1
jax: 0.10.0
libtpu: 0.0.40
codegen_flags: <defaults>
</compile_context>

<pallas_src>
import functools

import jax
import jax.numpy as jnp
from jax.experimental import pallas as pl
from jax.experimental.pallas import tpu as pltpu


# ----------------------------- helpers ------------------------------------


def _layernorm(x, g, b, eps=1e-12):
    mu = jnp.mean(x, axis=-1, keepdims=True)
    var = jnp.mean((x - mu) ** 2, axis=-1, keepdims=True)
    return (x - mu) * jax.lax.rsqrt(var + eps) * g + b


def _resident_spec(arr):
    """Full-array, grid-invariant block; single-buffered (constant index_map)."""
    nd = arr.ndim
    return pl.BlockSpec(
        arr.shape,
        lambda b, _nd=nd: (0,) * _nd,
        pipeline_mode=pl.Buffered(1),
    )


def _vmem_limit_bytes(frac=0.80, default=64 * 1024 * 1024):
    """~80% of physical VMEM (128 MiB on v5e/v6e, 64 MiB per TC on v7x)."""
    try:
        cap = getattr(pltpu.get_tpu_info(), "vmem_capacity_bytes", None)
        if cap:
            return int(cap * frac)
    except Exception:
        pass
    return default


# --------------------------- FastAttention kernel ---------------------------


def fast_attention_kernel(
    h_ref, mask_ref,
    wqk_ref, bqk_ref, wqa_ref, wka_ref, attb_ref,
    wt_ref, wo_ref, vecs_ref, expand_ref,
    out_ref,
):
    Bt, S, H = h_ref.shape
    nh = wqa_ref.shape[1]
    d = H // nh
    inv_sqrt_d = 1.0 / float(d) ** 0.5
    R = Bt * S
    bf = jnp.bfloat16

    dot = functools.partial(jnp.dot, preferred_element_type=jnp.float32)

    # packed small vectors (static slices)
    bqa = attb_ref[0:1, :]           # (1, nh)  f32
    bka = attb_ref[1:2, :]           # (1, nh)  f32
    bt = vecs_ref[0:1, :]            # (1, H)   f32
    bo = vecs_ref[1:2, :]
    lng = vecs_ref[2:3, :]
    lnb = vecs_ref[3:4, :]

    # ---- load & fuse batch into the matmul M dimension ---------------------
    h = h_ref[...].astype(jnp.float32)               # (Bt, S, H)
    h2d = h.reshape(R, H)
    h_bf = h2d.astype(bf)

    # additive attention mask, rebuilt in f32 from the 0/1 keep mask (bf16)
    keep = mask_ref[...].astype(jnp.float32)         # (Bt, S, nh)
    bias = (1.0 - keep) * -10000.0

    expand = expand_ref[...]                         # (nh, H) bf16, exact 0/1

    # ---- FastSelfAttention --------------------------------------------------
    # fused Q|K projection: one (R, H) x (H, 2H) matmul
    qk = dot(h_bf, wqk_ref[...]) + bqk_ref[...]      # (R, 2H) f32
    mq2d = qk[:, :H]                                 # mixed_query_layer (R, H)
    mk2d = qk[:, H:]                                 # mixed_key_layer   (R, H)
    mq = mq2d.reshape(Bt, S, H)
    mk = mk2d.reshape(Bt, S, H)

    # query attention weights: softmax over the sequence axis, per head
    q_score = (dot(mq2d.astype(bf), wqa_ref[...]) + bqa) * inv_sqrt_d
    q_score = q_score.reshape(Bt, S, nh) + bias
    q_score = q_score - jnp.max(q_score, axis=1, keepdims=True)
    qe = jnp.exp(q_score)
    qw = qe * pl.reciprocal(jnp.sum(qe, axis=1, keepdims=True), approx=True)

    # pooled query (per head) without head slicing: expand weights nh -> H
    qw_exp = dot(qw.reshape(R, nh).astype(bf), expand).reshape(Bt, S, H)
    pooled_q = jnp.sum(qw_exp * mq, axis=1, keepdims=True)        # (Bt, 1, H)

    mqk = mk * pooled_q                                           # (Bt, S, H)
    mqk2d = mqk.reshape(R, H)

    # key attention weights
    k_score = (dot(mqk2d.astype(bf), wka_ref[...]) + bka) * inv_sqrt_d
    k_score = k_score.reshape(Bt, S, nh) + bias
    k_score = k_score - jnp.max(k_score, axis=1, keepdims=True)
    ke = jnp.exp(k_score)
    kw = ke * pl.reciprocal(jnp.sum(ke, axis=1, keepdims=True), approx=True)

    kw_exp = dot(kw.reshape(R, nh).astype(bf), expand).reshape(Bt, S, H)
    pooled_k = jnp.sum(kw_exp * mqk, axis=1, keepdims=True)       # (Bt, 1, H)

    # weighted value = pooled_key * query_layer (per head == elementwise in H)
    wv2d = (pooled_k * mq).reshape(R, H)
    self_out = dot(wv2d.astype(bf), wt_ref[...]) + bt + mq2d

    # ---- BertSelfOutput: dense + (dropout=id) + residual + LayerNorm --------
    # TODO(synk): dropout is eval-mode identity (no RNG in the forward spec).
    attn = dot(self_out.astype(bf), wo_ref[...]) + bo + h2d
    out = _layernorm(attn, lng, lnb)

    out_ref[...] = out.reshape(Bt, S, H).astype(out_ref.dtype)


def fast_attention(hidden_states, attention_mask, params, *, block_b=None,
                   interpret=False):
    """hidden_states: (B, S, H) f32; attention_mask: (B, S) 0/1 keep mask."""
    B, S, H = hidden_states.shape
    nh = params["wqa"].shape[1]
    d = H // nh
    out_dtype = hidden_states.dtype

    # pad sequence to a sublane multiple so in-kernel reshapes are layout-free
    s_pad = (-S) % 8
    if s_pad:
        hidden_states = jnp.pad(hidden_states, ((0, 0), (0, s_pad), (0, 0)))
        attention_mask = jnp.pad(attention_mask, ((0, 0), (0, s_pad)))
    Sp = S + s_pad

    if block_b is None:
        # target Bt*Sp ≈ 512 matmul rows, but keep >= 2 grid steps (v7x: 2 TCs)
        block_b = max(1, min(B, 512 // Sp)) if Sp <= 512 else 1
        if B >= 2:
            block_b = min(block_b, max(1, B // 2))
    while B % block_b:
        block_b -= 1

    bf = jnp.bfloat16

    # fused / packed weights (all grid-invariant, single-buffered in VMEM)
    wqk = jnp.concatenate([params["wq"].astype(bf),
                           params["wk"].astype(bf)], axis=1)           # (H, 2H)
    bqk = jnp.concatenate([params["bq"], params["bk"]],
                          axis=1).astype(jnp.float32)                  # (1, 2H)
    wqa = params["wqa"].astype(bf)                                     # (H, nh)
    wka = params["wka"].astype(bf)                                     # (H, nh)
    attb = jnp.concatenate([params["bqa"], params["bka"]],
                           axis=0).astype(jnp.float32)                 # (2, nh)
    wt = params["wt"].astype(bf)                                       # (H, H)
    wo = params["wo"].astype(bf)                                       # (H, H)
    vecs = jnp.concatenate(
        [params["bt"], params["bo"], params["lng"], params["lnb"]],
        axis=0).astype(jnp.float32)                                    # (4, H)

    # block-diagonal head expander: expand[n, n*d + j] = 1 (exact in bf16)
    expand = (jnp.arange(H)[None, :] // d ==
              jnp.arange(nh)[:, None]).astype(bf)                      # (nh, H)

    # 0/1 keep mask broadcast across heads, shipped as bf16 (half the bytes)
    keep = jnp.broadcast_to(
        attention_mask.astype(bf)[:, :, None], (B, Sp, nh))

    weights = (wqk, bqk, wqa, wka, attb, wt, wo, vecs, expand)

    in_specs = [
        pl.BlockSpec((block_b, Sp, H), lambda b: (b, 0, 0)),
        pl.BlockSpec((block_b, Sp, nh), lambda b: (b, 0, 0)),
    ] + [_resident_spec(w) for w in weights]

    out = pl.pallas_call(
        fast_attention_kernel,
        out_shape=jax.ShapeDtypeStruct((B, Sp, H), out_dtype),
        grid_spec=pltpu.PrefetchScalarGridSpec(
            num_scalar_prefetch=0,
            grid=(B // block_b,),
            in_specs=in_specs,
            out_specs=pl.BlockSpec((block_b, Sp, H), lambda b: (b, 0, 0)),
        ),
        compiler_params=pltpu.CompilerParams(
            # TODO(synk): flip to pltpu.CORE_PARALLEL on v7x for explicit
            # per-TensorCore batch sharding.
            dimension_semantics=("parallel",),
            vmem_limit_bytes=_vmem_limit_bytes(),
        ),
        interpret=interpret,
    )(hidden_states, keep, *weights)

    if s_pad:
        out = out[:, :S, :]
    return out


# ----------------------------- parameter init -------------------------------


def init_params(key, hidden, n_heads, wdtype=jnp.bfloat16):
    ks = jax.random.split(key, 6)

    def w(k, shape):
        return (jax.random.normal(k, shape, jnp.float32) * 0.2).astype(wdtype)

    return {
        "wq": w(ks[0], (hidden, hidden)),
        "bq": jnp.zeros((1, hidden), jnp.float32),
        "wqa": w(ks[1], (hidden, n_heads)),
        "bqa": jnp.zeros((1, n_heads), jnp.float32),
        "wk": w(ks[2], (hidden, hidden)),
        "bk": jnp.zeros((1, hidden), jnp.float32),
        "wka": w(ks[3], (hidden, n_heads)),
        "bka": jnp.zeros((1, n_heads), jnp.float32),
        "wt": w(ks[4], (hidden, hidden)),
        "bt": jnp.zeros((1, hidden), jnp.float32),
        "wo": w(ks[5], (hidden, hidden)),
        "bo": jnp.zeros((1, hidden), jnp.float32),
        "lng": jnp.ones((1, hidden), jnp.float32),
        "lnb": jnp.zeros((1, hidden), jnp.float32),
    }


# --------------------------------- main -------------------------------------


if __name__ == "__main__":
    # small, module-consistent shapes
    B, S, H, NH = 2, 8, 32, 4

    key = jax.random.PRNGKey(0)
    pkey, hkey = jax.random.split(key)

    params = init_params(pkey, H, NH)
    hidden_states = jax.random.normal(hkey, (B, S, H), jnp.float32)
    # keep mask: 1 = attend, 0 = pad (last two positions of batch 1 padded)
    attention_mask = jnp.ones((B, S), jnp.float32).at[1, S - 2:].set(0.0)

    out = fast_attention(hidden_states, attention_mask, params)
    out = jax.block_until_ready(out)

    assert out.shape == (B, S, H)
    assert bool(jnp.all(jnp.isfinite(out)))
    print("KERNEL_OK")
</pallas_src>

<mosaic_0001>
module attributes {stable_mosaic.version = 11 : i64} {
  func.func @fast_attention_kernel(%arg0: i32, %arg1: memref<1x8x32xf32, #tpu.memory_space<vmem>>, %arg2: memref<1x8x4xbf16, #tpu.memory_space<vmem>>, %arg3: memref<32x64xbf16, #tpu.memory_space<vmem>>, %arg4: memref<1x64xf32, #tpu.memory_space<vmem>>, %arg5: memref<32x4xbf16, #tpu.memory_space<vmem>>, %arg6: memref<32x4xbf16, #tpu.memory_space<vmem>>, %arg7: memref<2x4xf32, #tpu.memory_space<vmem>>, %arg8: memref<32x32xbf16, #tpu.memory_space<vmem>>, %arg9: memref<32x32xbf16, #tpu.memory_space<vmem>>, %arg10: memref<4x32xf32, #tpu.memory_space<vmem>>, %arg11: memref<4x32xbf16, #tpu.memory_space<vmem>>, %arg12: memref<1x8x32xf32, #tpu.memory_space<vmem>>) attributes {dimension_semantics = [#tpu.dimension_semantics<parallel>], iteration_bounds = array<i64: 2>, scalar_prefetch = 0 : i64, scratch_operands = 0 : i64, tpu.core_type = #tpu.core_type<tc>, window_params = [{transform_indices = @transform_0, window_bounds = array<i64: 1, 8, 32>}, {transform_indices = @transform_1, window_bounds = array<i64: 1, 8, 4>}, {pipeline_mode = #tpu.pipeline_mode<synchronous>, transform_indices = @transform_2, window_bounds = array<i64: 32, 64>}, {pipeline_mode = #tpu.pipeline_mode<synchronous>, transform_indices = @transform_3, window_bounds = array<i64: 1, 64>}, {pipeline_mode = #tpu.pipeline_mode<synchronous>, transform_indices = @transform_4, window_bounds = array<i64: 32, 4>}, {pipeline_mode = #tpu.pipeline_mode<synchronous>, transform_indices = @transform_5, window_bounds = array<i64: 32, 4>}, {pipeline_mode = #tpu.pipeline_mode<synchronous>, transform_indices = @transform_6, window_bounds = array<i64: 2, 4>}, {pipeline_mode = #tpu.pipeline_mode<synchronous>, transform_indices = @transform_7, window_bounds = array<i64: 32, 32>}, {pipeline_mode = #tpu.pipeline_mode<synchronous>, transform_indices = @transform_8, window_bounds = array<i64: 32, 32>}, {pipeline_mode = #tpu.pipeline_mode<synchronous>, transform_indices = @transform_9, window_bounds = array<i64: 4, 32>}, {pipeline_mode = #tpu.pipeline_mode<synchronous>, transform_indices = @transform_10, window_bounds = array<i64: 4, 32>}, {transform_indices = @transform_11, window_bounds = array<i64: 1, 8, 32>}]} {
    %c0 = arith.constant 0 : index
    %c0_0 = arith.constant 0 : index
    %0 = vector.load %arg7[%c0, %c0_0] : memref<2x4xf32, #tpu.memory_space<vmem>>, vector<1x4xf32>
    %c1 = arith.constant 1 : index
    %c0_1 = arith.constant 0 : index
    %1 = vector.load %arg7[%c1, %c0_1] : memref<2x4xf32, #tpu.memory_space<vmem>>, vector<1x4xf32>
    %c0_2 = arith.constant 0 : index
    %c0_3 = arith.constant 0 : index
    %2 = vector.load %arg10[%c0_2, %c0_3] : memref<4x32xf32, #tpu.memory_space<vmem>>, vector<1x32xf32>
    %c1_4 = arith.constant 1 : index
    %c0_5 = arith.constant 0 : index
    %3 = vector.load %arg10[%c1_4, %c0_5] : memref<4x32xf32, #tpu.memory_space<vmem>>, vector<1x32xf32>
    %c2 = arith.constant 2 : index
    %c0_6 = arith.constant 0 : index
    %4 = vector.load %arg10[%c2, %c0_6] : memref<4x32xf32, #tpu.memory_space<vmem>>, vector<1x32xf32>
    %c3 = arith.constant 3 : index
    %c0_7 = arith.constant 0 : index
    %5 = vector.load %arg10[%c3, %c0_7] : memref<4x32xf32, #tpu.memory_space<vmem>>, vector<1x32xf32>
    %c0_8 = arith.constant 0 : index
    %c0_9 = arith.constant 0 : index
    %c0_10 = arith.constant 0 : index
    %6 = vector.load %arg1[%c0_8, %c0_9, %c0_10] : memref<1x8x32xf32, #tpu.memory_space<vmem>>, vector<1x8x32xf32>
    %7 = vector.shape_cast %6 : vector<1x8x32xf32> to vector<8x32xf32>
    %8 = arith.truncf %7 : vector<8x32xf32> to vector<8x32xbf16>
    %c0_11 = arith.constant 0 : index
    %c0_12 = arith.constant 0 : index
    %c0_13 = arith.constant 0 : index
    %9 = vector.load %arg2[%c0_11, %c0_12, %c0_13] : memref<1x8x4xbf16, #tpu.memory_space<vmem>>, vector<1x8x4xbf16>
    %10 = arith.extf %9 : vector<1x8x4xbf16> to vector<1x8x4xf32>
    %cst = arith.constant 1.000000e+00 : f32
    %11 = vector.broadcast %cst : f32 to vector<1x8x4xf32>
    %12 = arith.subf %11, %10 : vector<1x8x4xf32>
    %cst_14 = arith.constant -1.000000e+04 : f32
    %13 = vector.broadcast %cst_14 : f32 to vector<1x8x4xf32>
    %14 = arith.mulf %12, %13 : vector<1x8x4xf32>
    %c0_15 = arith.constant 0 : index
    %c0_16 = arith.constant 0 : index
    %15 = vector.load %arg11[%c0_15, %c0_16] : memref<4x32xbf16, #tpu.memory_space<vmem>>, vector<4x32xbf16>
    %c0_17 = arith.constant 0 : index
    %c0_18 = arith.constant 0 : index
    %16 = vector.load %arg3[%c0_17, %c0_18] : memref<32x64xbf16, #tpu.memory_space<vmem>>, vector<32x64xbf16>
    %cst_19 = arith.constant dense<0.000000e+00> : vector<8x64xf32>
    %17 = tpu.matmul %8, %16, %cst_19 {dimension_numbers = #tpu.dot_dimension_numbers<[1], [0], [0], [1], [0, 0, 1, 1], [], []>} : vector<8x32xbf16>, vector<32x64xbf16>, vector<8x64xf32> -> vector<8x64xf32>
    %c0_20 = arith.constant 0 : index
    %c0_21 = arith.constant 0 : index
    %18 = vector.load %arg4[%c0_20, %c0_21] : memref<1x64xf32, #tpu.memory_space<vmem>>, vector<1x64xf32>
    %19 = vector.broadcast %18 : vector<1x64xf32> to vector<8x64xf32>
    %20 = arith.addf %17, %19 : vector<8x64xf32>
    %21 = vector.extract_strided_slice %20 {offsets = [0, 0], sizes = [8, 32], strides = [1, 1]} : vector<8x64xf32> to vector<8x32xf32>
    %22 = vector.extract_strided_slice %20 {offsets = [0, 32], sizes = [8, 32], strides = [1, 1]} : vector<8x64xf32> to vector<8x32xf32>
    %23 = vector.shape_cast %21 : vector<8x32xf32> to vector<1x8x32xf32>
    %24 = vector.shape_cast %22 : vector<8x32xf32> to vector<1x8x32xf32>
    %25 = arith.truncf %21 : vector<8x32xf32> to vector<8x32xbf16>
    %c0_22 = arith.constant 0 : index
    %c0_23 = arith.constant 0 : index
    %26 = vector.load %arg5[%c0_22, %c0_23] : memref<32x4xbf16, #tpu.memory_space<vmem>>, vector<32x4xbf16>
    %cst_24 = arith.constant dense<0.000000e+00> : vector<8x4xf32>
    %27 = tpu.matmul %25, %26, %cst_24 {dimension_numbers = #tpu.dot_dimension_numbers<[1], [0], [0], [1], [0, 0, 1, 1], [], []>} : vector<8x32xbf16>, vector<32x4xbf16>, vector<8x4xf32> -> vector<8x4xf32>
    %28 = vector.broadcast %0 : vector<1x4xf32> to vector<8x4xf32>
    %29 = arith.addf %27, %28 : vector<8x4xf32>
    %cst_25 = arith.constant 0.353553385 : f32
    %30 = vector.broadcast %cst_25 : f32 to vector<8x4xf32>
    %31 = arith.mulf %29, %30 : vector<8x4xf32>
    %32 = vector.shape_cast %31 : vector<8x4xf32> to vector<1x8x4xf32>
    %33 = arith.addf %32, %14 : vector<1x8x4xf32>
    %cst_26 = arith.constant dense<0xFF800000> : vector<1x4xf32>
    %34 = vector.multi_reduction <maximumf>, %33, %cst_26 [1] : vector<1x8x4xf32> to vector<1x4xf32>
    %35 = vector.shape_cast %34 : vector<1x4xf32> to vector<1x1x4xf32>
    %36 = vector.broadcast %35 : vector<1x1x4xf32> to vector<1x8x4xf32>
    %37 = arith.subf %33, %36 : vector<1x8x4xf32>
    %38 = math.exp %37 : vector<1x8x4xf32>
    %cst_27 = arith.constant dense<0.000000e+00> : vector<1x4xf32>
    %39 = vector.multi_reduction <add>, %38, %cst_27 [1] : vector<1x8x4xf32> to vector<1x4xf32>
    %40 = vector.shape_cast %39 : vector<1x4xf32> to vector<1x1x4xf32>
    %41 = tpu.reciprocal %40 {approx = true} : vector<1x1x4xf32> -> vector<1x1x4xf32>
    %42 = vector.broadcast %41 : vector<1x1x4xf32> to vector<1x8x4xf32>
    %43 = arith.mulf %38, %42 : vector<1x8x4xf32>
    %44 = vector.shape_cast %43 : vector<1x8x4xf32> to vector<8x4xf32>
    %45 = arith.truncf %44 : vector<8x4xf32> to vector<8x4xbf16>
    %cst_28 = arith.constant dense<0.000000e+00> : vector<8x32xf32>
    %46 = tpu.matmul %45, %15, %cst_28 {dimension_numbers = #tpu.dot_dimension_numbers<[1], [0], [0], [1], [0, 0, 1, 1], [], []>} : vector<8x4xbf16>, vector<4x32xbf16>, vector<8x32xf32> -> vector<8x32xf32>
    %47 = vector.shape_cast %46 : vector<8x32xf32> to vector<1x8x32xf32>
    %48 = arith.mulf %47, %23 : vector<1x8x32xf32>
    %cst_29 = arith.constant dense<0.000000e+00> : vector<1x32xf32>
    %49 = vector.multi_reduction <add>, %48, %cst_29 [1] : vector<1x8x32xf32> to vector<1x32xf32>
    %50 = vector.shape_cast %49 : vector<1x32xf32> to vector<1x1x32xf32>
    %51 = vector.broadcast %50 : vector<1x1x32xf32> to vector<1x8x32xf32>
    %52 = arith.mulf %24, %51 : vector<1x8x32xf32>
    %53 = vector.shape_cast %52 : vector<1x8x32xf32> to vector<8x32xf32>
    %54 = arith.truncf %53 : vector<8x32xf32> to vector<8x32xbf16>
    %c0_30 = arith.constant 0 : index
    %c0_31 = arith.constant 0 : index
    %55 = vector.load %arg6[%c0_30, %c0_31] : memref<32x4xbf16, #tpu.memory_space<vmem>>, vector<32x4xbf16>
    %cst_32 = arith.constant dense<0.000000e+00> : vector<8x4xf32>
    %56 = tpu.matmul %54, %55, %cst_32 {dimension_numbers = #tpu.dot_dimension_numbers<[1], [0], [0], [1], [0, 0, 1, 1], [], []>} : vector<8x32xbf16>, vector<32x4xbf16>, vector<8x4xf32> -> vector<8x4xf32>
    %57 = vector.broadcast %1 : vector<1x4xf32> to vector<8x4xf32>
    %58 = arith.addf %56, %57 : vector<8x4xf32>
    %cst_33 = arith.constant 0.353553385 : f32
    %59 = vector.broadcast %cst_33 : f32 to vector<8x4xf32>
    %60 = arith.mulf %58, %59 : vector<8x4xf32>
    %61 = vector.shape_cast %60 : vector<8x4xf32> to vector<1x8x4xf32>
    %62 = arith.addf %61, %14 : vector<1x8x4xf32>
    %cst_34 = arith.constant dense<0xFF800000> : vector<1x4xf32>
    %63 = vector.multi_reduction <maximumf>, %62, %cst_34 [1] : vector<1x8x4xf32> to vector<1x4xf32>
    %64 = vector.shape_cast %63 : vector<1x4xf32> to vector<1x1x4xf32>
    %65 = vector.broadcast %64 : vector<1x1x4xf32> to vector<1x8x4xf32>
    %66 = arith.subf %62, %65 : vector<1x8x4xf32>
    %67 = math.exp %66 : vector<1x8x4xf32>
    %cst_35 = arith.constant dense<0.000000e+00> : vector<1x4xf32>
    %68 = vector.multi_reduction <add>, %67, %cst_35 [1] : vector<1x8x4xf32> to vector<1x4xf32>
    %69 = vector.shape_cast %68 : vector<1x4xf32> to vector<1x1x4xf32>
    %70 = tpu.reciprocal %69 {approx = true} : vector<1x1x4xf32> -> vector<1x1x4xf32>
    %71 = vector.broadcast %70 : vector<1x1x4xf32> to vector<1x8x4xf32>
    %72 = arith.mulf %67, %71 : vector<1x8x4xf32>
    %73 = vector.shape_cast %72 : vector<1x8x4xf32> to vector<8x4xf32>
    %74 = arith.truncf %73 : vector<8x4xf32> to vector<8x4xbf16>
    %cst_36 = arith.constant dense<0.000000e+00> : vector<8x32xf32>
    %75 = tpu.matmul %74, %15, %cst_36 {dimension_numbers = #tpu.dot_dimension_numbers<[1], [0], [0], [1], [0, 0, 1, 1], [], []>} : vector<8x4xbf16>, vector<4x32xbf16>, vector<8x32xf32> -> vector<8x32xf32>
    %76 = vector.shape_cast %75 : vector<8x32xf32> to vector<1x8x32xf32>
    %77 = arith.mulf %76, %52 : vector<1x8x32xf32>
    %cst_37 = arith.constant dense<0.000000e+00> : vector<1x32xf32>
    %78 = vector.multi_reduction <add>, %77, %cst_37 [1] : vector<1x8x32xf32> to vector<1x32xf32>
    %79 = vector.shape_cast %78 : vector<1x32xf32> to vector<1x1x32xf32>
    %80 = vector.broadcast %79 : vector<1x1x32xf32> to vector<1x8x32xf32>
    %81 = arith.mulf %80, %23 : vector<1x8x32xf32>
    %82 = vector.shape_cast %81 : vector<1x8x32xf32> to vector<8x32xf32>
    %83 = arith.truncf %82 : vector<8x32xf32> to vector<8x32xbf16>
    %c0_38 = arith.constant 0 : index
    %c0_39 = arith.constant 0 : index
    %84 = vector.load %arg8[%c0_38, %c0_39] : memref<32x32xbf16, #tpu.memory_space<vmem>>, vector<32x32xbf16>
    %cst_40 = arith.constant dense<0.000000e+00> : vector<8x32xf32>
    %85 = tpu.matmul %83, %84, %cst_40 {dimension_numbers = #tpu.dot_dimension_numbers<[1], [0], [0], [1], [0, 0, 1, 1], [], []>} : vector<8x32xbf16>, vector<32x32xbf16>, vector<8x32xf32> -> vector<8x32xf32>
    %86 = vector.broadcast %2 : vector<1x32xf32> to vector<8x32xf32>
    %87 = arith.addf %85, %86 : vector<8x32xf32>
    %88 = arith.addf %87, %21 : vector<8x32xf32>
    %89 = arith.truncf %88 : vector<8x32xf32> to vector<8x32xbf16>
    %c0_41 = arith.constant 0 : index
    %c0_42 = arith.constant 0 : index
    %90 = vector.load %arg9[%c0_41, %c0_42] : memref<32x32xbf16, #tpu.memory_space<vmem>>, vector<32x32xbf16>
    %cst_43 = arith.constant dense<0.000000e+00> : vector<8x32xf32>
    %91 = tpu.matmul %89, %90, %cst_43 {dimension_numbers = #tpu.dot_dimension_numbers<[1], [0], [0], [1], [0, 0, 1, 1], [], []>} : vector<8x32xbf16>, vector<32x32xbf16>, vector<8x32xf32> -> vector<8x32xf32>
    %92 = vector.broadcast %3 : vector<1x32xf32> to vector<8x32xf32>
    %93 = arith.addf %91, %92 : vector<8x32xf32>
    %94 = arith.addf %93, %7 : vector<8x32xf32>
    %cst_44 = arith.constant dense<0.000000e+00> : vector<8xf32>
    %95 = vector.multi_reduction <add>, %94, %cst_44 [1] : vector<8x32xf32> to vector<8xf32>
    %96 = vector.shape_cast %95 : vector<8xf32> to vector<8x1xf32>
    %cst_45 = arith.constant 3.200000e+01 : f32
    %97 = vector.broadcast %cst_45 : f32 to vector<8x1xf32>
    %98 = arith.divf %96, %97 : vector<8x1xf32>
    %99 = vector.broadcast %98 : vector<8x1xf32> to vector<8x32xf32>
    %100 = arith.subf %94, %99 : vector<8x32xf32>
    %101 = arith.mulf %100, %100 : vector<8x32xf32>
    %cst_46 = arith.constant dense<0.000000e+00> : vector<8xf32>
    %102 = vector.multi_reduction <add>, %101, %cst_46 [1] : vector<8x32xf32> to vector<8xf32>
    %103 = vector.shape_cast %102 : vector<8xf32> to vector<8x1xf32>
    %cst_47 = arith.constant 3.200000e+01 : f32
    %104 = vector.broadcast %cst_47 : f32 to vector<8x1xf32>
    %105 = arith.divf %103, %104 : vector<8x1xf32>
    %106 = vector.broadcast %98 : vector<8x1xf32> to vector<8x32xf32>
    %107 = arith.subf %94, %106 : vector<8x32xf32>
    %cst_48 = arith.constant 9.99999996E-13 : f32
    %108 = vector.broadcast %cst_48 : f32 to vector<8x1xf32>
    %109 = arith.addf %105, %108 : vector<8x1xf32>
    %110 = math.rsqrt %109 : vector<8x1xf32>
    %111 = vector.broadcast %110 : vector<8x1xf32> to vector<8x32xf32>
    %112 = arith.mulf %107, %111 : vector<8x32xf32>
    %113 = vector.broadcast %4 : vector<1x32xf32> to vector<8x32xf32>
    %114 = arith.mulf %112, %113 : vector<8x32xf32>
    %115 = vector.broadcast %5 : vector<1x32xf32> to vector<8x32xf32>
    %116 = arith.addf %114, %115 : vector<8x32xf32>
    %117 = vector.shape_cast %116 : vector<8x32xf32> to vector<1x8x32xf32>
    %c0_49 = arith.constant 0 : index
    %c0_50 = arith.constant 0 : index
    %c0_51 = arith.constant 0 : index
    %118 = vector.load %arg12[%c0_49, %c0_50, %c0_51] : memref<1x8x32xf32, #tpu.memory_space<vmem>>, vector<1x8x32xf32>
    tpu.vector_store %arg12[%c0_49, %c0_50, %c0_51], %117 {strides = array<i32>} : memref<1x8x32xf32, #tpu.memory_space<vmem>>, vector<1x8x32xf32>,
    return
  }
  func.func @transform_0(%arg0: i32) -> (i32, i32, i32) {
    %c0_i32 = arith.constant 0 : i32
    %c0_i32_0 = arith.constant 0 : i32
    %c0_i32_1 = arith.constant 0 : i32
    return %arg0, %c0_i32, %c0_i32_0 : i32, i32, i32
  }
  func.func @transform_1(%arg0: i32) -> (i32, i32, i32) {
    %c0_i32 = arith.constant 0 : i32
    %c0_i32_0 = arith.constant 0 : i32
    %c0_i32_1 = arith.constant 0 : i32
    return %arg0, %c0_i32, %c0_i32_0 : i32, i32, i32
  }
  func.func @transform_2(%arg0: i32) -> (i32, i32) {
    %c0_i32 = arith.constant 0 : i32
    %c0_i32_0 = arith.constant 0 : i32
    %c0_i32_1 = arith.constant 0 : i32
    return %c0_i32, %c0_i32_0 : i32, i32
  }
  func.func @transform_3(%arg0: i32) -> (i32, i32) {
    %c0_i32 = arith.constant 0 : i32
    %c0_i32_0 = arith.constant 0 : i32
    %c0_i32_1 = arith.constant 0 : i32
    return %c0_i32, %c0_i32_0 : i32, i32
  }
  func.func @transform_4(%arg0: i32) -> (i32, i32) {
    %c0_i32 = arith.constant 0 : i32
    %c0_i32_0 = arith.constant 0 : i32
    %c0_i32_1 = arith.constant 0 : i32
    return %c0_i32, %c0_i32_0 : i32, i32
  }
  func.func @transform_5(%arg0: i32) -> (i32, i32) {
    %c0_i32 = arith.constant 0 : i32
    %c0_i32_0 = arith.constant 0 : i32
    %c0_i32_1 = arith.constant 0 : i32
    return %c0_i32, %c0_i32_0 : i32, i32
  }
  func.func @transform_6(%arg0: i32) -> (i32, i32) {
    %c0_i32 = arith.constant 0 : i32
    %c0_i32_0 = arith.constant 0 : i32
    %c0_i32_1 = arith.constant 0 : i32
    return %c0_i32, %c0_i32_0 : i32, i32
  }
  func.func @transform_7(%arg0: i32) -> (i32, i32) {
    %c0_i32 = arith.constant 0 : i32
    %c0_i32_0 = arith.constant 0 : i32
    %c0_i32_1 = arith.constant 0 : i32
    return %c0_i32, %c0_i32_0 : i32, i32
  }
  func.func @transform_8(%arg0: i32) -> (i32, i32) {
    %c0_i32 = arith.constant 0 : i32
    %c0_i32_0 = arith.constant 0 : i32
    %c0_i32_1 = arith.constant 0 : i32
    return %c0_i32, %c0_i32_0 : i32, i32
  }
  func.func @transform_9(%arg0: i32) -> (i32, i32) {
    %c0_i32 = arith.constant 0 : i32
    %c0_i32_0 = arith.constant 0 : i32
    %c0_i32_1 = arith.constant 0 : i32
    return %c0_i32, %c0_i32_0 : i32, i32
  }
  func.func @transform_10(%arg0: i32) -> (i32, i32) {
    %c0_i32 = arith.constant 0 : i32
    %c0_i32_0 = arith.constant 0 : i32
    %c0_i32_1 = arith.constant 0 : i32
    return %c0_i32, %c0_i32_0 : i32, i32
  }
  func.func @transform_11(%arg0: i32) -> (i32, i32, i32) {
    %c0_i32 = arith.constant 0 : i32
    %c0_i32_0 = arith.constant 0 : i32
    %c0_i32_1 = arith.constant 0 : i32
    return %arg0, %c0_i32, %c0_i32_0 : i32, i32, i32
  }
}

</mosaic_0001>

<llo_original>
// kernel: tpu_custom_call.1
$region0: #{tpu_custom_call.1}
  #allocation0 [shape = 'u32[]', space=smem, size = 0x4, offset = 0x4, fixed_abs, tag = 'smem constant byte address 0x4 - core index']
  #allocation1 [shape = 'u32[144,128]{1,0:T(1,128)}', space=vmem, size = 0x12000, scoped, tag = 'internal scratch']
  %s0 = inlined_call_operand.hbm [shape: f32[2,8,32], index: 0, kind: input, shape index: {}]
  %s1 = inlined_call_operand.hbm [shape: bf16[2,8,4], index: 1, kind: input, shape index: {}]
  %s2 = inlined_call_operand.hbm [shape: bf16[32,64], index: 2, kind: input, shape index: {}]
  %s3 = inlined_call_operand.hbm [shape: f32[1,64], index: 3, kind: input, shape index: {}]
  %s4 = inlined_call_operand.hbm [shape: bf16[32,4], index: 4, kind: input, shape index: {}]
  %s5 = inlined_call_operand.hbm [shape: bf16[32,4], index: 5, kind: input, shape index: {}]
  %s6 = inlined_call_operand.hbm [shape: f32[2,4], index: 6, kind: input, shape index: {}]
  %s7 = inlined_call_operand.hbm [shape: bf16[32,32], index: 7, kind: input, shape index: {}]
  %s8 = inlined_call_operand.hbm [shape: bf16[32,32], index: 8, kind: input, shape index: {}]
  %s9 = inlined_call_operand.hbm [shape: f32[4,32], index: 9, kind: input, shape index: {}]
  %s10 = inlined_call_operand.hbm [shape: bf16[4,32], index: 10, kind: input, shape index: {}]
  %s11 = inlined_call_operand.hbm [shape: f32[2,8,32], index: 11, kind: output, shape index: {}]
  %s12 = sld [smem:[#allocation0]]
  $region121: #{tpu_custom_call.1} parent=0
    _
  %s14 = ssub.s32 1, %s12
  %s15 = scalar_select 0, %s14, %s12
  $region1: #{tpu_custom_call.1} parent=0
    #allocation2 [shape = 'u8[8192]{0}', space=vmem, size = 0x2000, scoped, tag = 'input window, operand 0']
    #allocation3 [shape = 's32[2]{0}', space=sflag, size = 0x8, scoped, tag = 'scoped memory for tpu_custom_call.1']
    #allocation4 [shape = 's32[2]{0}', space=sflag, size = 0x8, scoped, tag = 'scoped memory for tpu_custom_call.1']
    #allocation5 [shape = 'u8[4096]{0}', space=vmem, size = 0x1000, scoped, tag = 'input window, operand 1']
    #allocation6 [shape = 's32[2]{0}', space=sflag, size = 0x8, scoped, tag = 'scoped memory for tpu_custom_call.1']
    #allocation7 [shape = 'u8[8192]{0}', space=vmem, size = 0x2000, scoped, tag = 'input window, operand 2, single buffered']
    #allocation8 [shape = 'u8[512]{0}', space=vmem, size = 0x400, scoped, tag = 'input window, operand 3, single buffered']
    #allocation9 [shape = 's32[1]{0}', space=sflag, size = 0x4, scoped, tag = 'scoped memory for tpu_custom_call.1']
    #allocation10 [shape = 'u8[8192]{0}', space=vmem, size = 0x2000, scoped, tag = 'input window, operand 4, single buffered']
    #allocation11 [shape = 'u8[8192]{0}', space=vmem, size = 0x2000, scoped, tag = 'input window, operand 5, single buffered']
    #allocation12 [shape = 's32[1]{0}', space=sflag, size = 0x4, scoped, tag = 'scoped memory for tpu_custom_call.1']
    #allocation13 [shape = 'u8[1024]{0}', space=vmem, size = 0x400, scoped, tag = 'input window, operand 6, single buffered']
    #allocation14 [shape = 'u8[8192]{0}', space=vmem, size = 0x2000, scoped, tag = 'input window, operand 7, single buffered']
    #allocation15 [shape = 's32[1]{0}', space=sflag, size = 0x4, scoped, tag = 'scoped memory for tpu_custom_call.1']
    #allocation16 [shape = 'u8[8192]{0}', space=vmem, size = 0x2000, scoped, tag = 'input window, operand 8, single buffered']
    #allocation17 [shape = 'u8[2048]{0}', space=vmem, size = 0x800, scoped, tag = 'input window, operand 9, single buffered']
    #allocation18 [shape = 's32[1]{0}', space=sflag, size = 0x4, scoped, tag = 'scoped memory for tpu_custom_call.1']
    #allocation19 [shape = 'u8[1024]{0}', space=vmem, size = 0x400, scoped, tag = 'input window, operand 10, single buffered']
    #allocation20 [shape = 'u8[8192]{0}', space=vmem, size = 0x2000, scoped, tag = 'output window, operand 0']
    %16 = vsyncpa [#allocation3], 0
    %s17 = scalar_lea.sflag [#allocation3], 1
    %18 = vsyncpa %s17, 0
    %19 = vsyncpa [#allocation6], 0
    %s20 = scalar_lea.sflag [#allocation6], 1
    %21 = vsyncpa %s20, 0
    %22 = vsyncpa [#allocation9], 0
    %23 = vsyncpa [#allocation12], 0
    %24 = vsyncpa [#allocation15], 0
    %25 = vsyncpa [#allocation18], 0
    %26 = vsyncpa [#allocation4], 0
    %s27 = scalar_lea.sflag [#allocation4], 1
    %28 = vsyncpa %s27, 0
    loop: start=0, step=1, limit=4
    $region2: #{tpu_custom_call.1} parent=1 // loop_pre_header
      _
    $region3: #{tpu_custom_call.1} parent=1 // loop_header
      %s30 = sphi 0, %s34
      %p31 = scmp.ge.s32.totalorder %s30, 4
      %s40 = sphi 0, %s42
      %s43 = sphi 0, %s40
      %s44 = sphi 0, %s43
      %s60 = sphi 0, %s44
      %s66 = sphi 0, %s68
      %s69 = sphi 0, %s66
      %s70 = sphi 0, %s69
      %s86 = sphi 0, %s70
      %s90 = sphi 0, %s90
      %s92 = sphi 0, %s90
      %s93 = sphi 0, %s92
      %s107 = sphi 0, %s93
      %s111 = sphi 0, %s111
      %s113 = sphi 0, %s111
      %s114 = sphi 0, %s113
      %s128 = sphi 0, %s114
      %s132 = sphi 0, %s132
      %s134 = sphi 0, %s132
      %s135 = sphi 0, %s134
      %s149 = sphi 0, %s135
      %s153 = sphi 0, %s153
      %s155 = sphi 0, %s153
      %s156 = sphi 0, %s155
      %s170 = sphi 0, %s156
      %s174 = sphi 0, %s174
      %s176 = sphi 0, %s174
      %s177 = sphi 0, %s176
      %s191 = sphi 0, %s177
      %s195 = sphi 0, %s195
      %s197 = sphi 0, %s195
      %s198 = sphi 0, %s197
      %s212 = sphi 0, %s198
      %s216 = sphi 0, %s216
      %s218 = sphi 0, %s216
      %s219 = sphi 0, %s218
      %s233 = sphi 0, %s219
      %s237 = sphi 0, %s237
      %s239 = sphi 0, %s237
      %s240 = sphi 0, %s239
      %s254 = sphi 0, %s240
      %s258 = sphi 0, %s258
      %s260 = sphi 0, %s258
      %s261 = sphi 0, %s260
      %s275 = sphi 0, %s261
      %s281 = sphi 0, %s283
      %s284 = sphi 0, %s281
      %s285 = sphi 0, %s284
      %s301 = sphi 0, %s285
    $region4: #{tpu_custom_call.1} parent=1 // loop_header_branch
      %33 = sbr.rel (%p31) target = $region8
    $region5: #{tpu_custom_call.1} parent=1 // loop_body
      %s35 = ssub.s32 %s30, 1
      %s36 = ssub.s32 %s30, 2
      %s37 = sadd.s32 %s30, 1
      %s38 = ssub.s32 %s30, %s37
      %p39 = scmp.eq.s32.totalorder %s38, 0
      %s41 = sadd.s32 %s40, 1
      %s42 = scalar_select %p39, %s40, %s41
      %p45 = pneg %p39
      %p46 = scmp.eq.s32.totalorder %s30, 1
      %p47 = por %p45, %p46
      %p48 = scmp.ne.s32.totalorder %s40, %s43
      %p49 = scmp.eq.s32.totalorder %s30, 0
      %p50 = por %p48, %p49
      %p51 = scmp.ne.s32.totalorder %s40, %s43
      %p52 = scmp.eq.s32.totalorder %s35, 1
      %p53 = por %p51, %p52
      %p54 = scmp.ne.s32.totalorder %s43, %s44
      %p55 = scmp.eq.s32.totalorder %s35, 0
      %p56 = por %p54, %p55
      %p57 = scmp.ne.s32.totalorder %s43, %s44
      %p58 = scmp.eq.s32.totalorder %s36, 1
      %p59 = por %p57, %p58
      %p61 = scmp.ne.s32.totalorder %s44, %s60
      %p62 = scmp.eq.s32.totalorder %s36, 0
      %p63 = por %p61, %p62
      %s64 = ssub.s32 %s30, %s37
      %p65 = scmp.eq.s32.totalorder %s64, 0
      %s67 = sadd.s32 %s66, 1
      %s68 = scalar_select %p65, %s66, %s67
      %p71 = pneg %p65
      %p72 = scmp.eq.s32.totalorder %s30, 1
      %p73 = por %p71, %p72
      %p74 = scmp.ne.s32.totalorder %s66, %s69
      %p75 = scmp.eq.s32.totalorder %s30, 0
      %p76 = por %p74, %p75
      %p77 = scmp.ne.s32.totalorder %s66, %s69
      %p78 = scmp.eq.s32.totalorder %s35, 1
      %p79 = por %p77, %p78
      %p80 = scmp.ne.s32.totalorder %s69, %s70
      %p81 = scmp.eq.s32.totalorder %s35, 0
      %p82 = por %p80, %p81
      %p83 = scmp.ne.s32.totalorder %s69, %s70
      %p84 = scmp.eq.s32.totalorder %s36, 1
      %p85 = por %p83, %p84
      %p87 = scmp.ne.s32.totalorder %s70, %s86
      %p88 = scmp.eq.s32.totalorder %s36, 0
      %p89 = por %p87, %p88
      %s91 = sadd.s32 %s90, 1
      %p94 = scmp.eq.s32.totalorder %s30, 1
      %p95 = scmp.ne.s32.totalorder %s90, %s92
      %p96 = scmp.eq.s32.totalorder %s30, 0
      %p97 = por %p95, %p96
      %p98 = scmp.ne.s32.totalorder %s90, %s92
      %p99 = scmp.eq.s32.totalorder %s35, 1
      %p100 = por %p98, %p99
      %p101 = scmp.ne.s32.totalorder %s92, %s93
      %p102 = scmp.eq.s32.totalorder %s35, 0
      %p103 = por %p101, %p102
      %p104 = scmp.ne.s32.totalorder %s92, %s93
      %p105 = scmp.eq.s32.totalorder %s36, 1
      %p106 = por %p104, %p105
      %p108 = scmp.ne.s32.totalorder %s93, %s107
      %p109 = scmp.eq.s32.totalorder %s36, 0
      %p110 = por %p108, %p109
      %s112 = sadd.s32 %s111, 1
      %p115 = scmp.eq.s32.totalorder %s30, 1
      %p116 = scmp.ne.s32.totalorder %s111, %s113
      %p117 = scmp.eq.s32.totalorder %s30, 0
      %p118 = por %p116, %p117
      %p119 = scmp.ne.s32.totalorder %s111, %s113
      %p120 = scmp.eq.s32.totalorder %s35, 1
      %p121 = por %p119, %p120
      %p122 = scmp.ne.s32.totalorder %s113, %s114
      %p123 = scmp.eq.s32.totalorder %s35, 0
      %p124 = por %p122, %p123
      %p125 = scmp.ne.s32.totalorder %s113, %s114
      %p126 = scmp.eq.s32.totalorder %s36, 1
      %p127 = por %p125, %p126
      %p129 = scmp.ne.s32.totalorder %s114, %s128
      %p130 = scmp.eq.s32.totalorder %s36, 0
      %p131 = por %p129, %p130
      %s133 = sadd.s32 %s132, 1
      %p136 = scmp.eq.s32.totalorder %s30, 1
      %p137 = scmp.ne.s32.totalorder %s132, %s134
      %p138 = scmp.eq.s32.totalorder %s30, 0
      %p139 = por %p137, %p138
      %p140 = scmp.ne.s32.totalorder %s132, %s134
      %p141 = scmp.eq.s32.totalorder %s35, 1
      %p142 = por %p140, %p141
      %p143 = scmp.ne.s32.totalorder %s134, %s135
      %p144 = scmp.eq.s32.totalorder %s35, 0
      %p145 = por %p143, %p144
      %p146 = scmp.ne.s32.totalorder %s134, %s135
      %p147 = scmp.eq.s32.totalorder %s36, 1
      %p148 = por %p146, %p147
      %p150 = scmp.ne.s32.totalorder %s135, %s149
      %p151 = scmp.eq.s32.totalorder %s36, 0
      %p152 = por %p150, %p151
      %s154 = sadd.s32 %s153, 1
      %p157 = scmp.eq.s32.totalorder %s30, 1
      %p158 = scmp.ne.s32.totalorder %s153, %s155
      %p159 = scmp.eq.s32.totalorder %s30, 0
      %p160 = por %p158, %p159
      %p161 = scmp.ne.s32.totalorder %s153, %s155
      %p162 = scmp.eq.s32.totalorder %s35, 1
      %p163 = por %p161, %p162
      %p164 = scmp.ne.s32.totalorder %s155, %s156
      %p165 = scmp.eq.s32.totalorder %s35, 0
      %p166 = por %p164, %p165
      %p167 = scmp.ne.s32.totalorder %s155, %s156
      %p168 = scmp.eq.s32.totalorder %s36, 1
      %p169 = por %p167, %p168
      %p171 = scmp.ne.s32.totalorder %s156, %s170
      %p172 = scmp.eq.s32.totalorder %s36, 0
      %p173 = por %p171, %p172
      %s175 = sadd.s32 %s174, 1
      %p178 = scmp.eq.s32.totalorder %s30, 1
      %p179 = scmp.ne.s32.totalorder %s174, %s176
      %p180 = scmp.eq.s32.totalorder %s30, 0
      %p181 = por %p179, %p180
      %p182 = scmp.ne.s32.totalorder %s174, %s176
      %p183 = scmp.eq.s32.totalorder %s35, 1
      %p184 = por %p182, %p183
      %p185 = scmp.ne.s32.totalorder %s176, %s177
      %p186 = scmp.eq.s32.totalorder %s35, 0
      %p187 = por %p185, %p186
      %p188 = scmp.ne.s32.totalorder %s176, %s177
      %p189 = scmp.eq.s32.totalorder %s36, 1
      %p190 = por %p188, %p189
      %p192 = scmp.ne.s32.totalorder %s177, %s191
      %p193 = scmp.eq.s32.totalorder %s36, 0
      %p194 = por %p192, %p193
      %s196 = sadd.s32 %s195, 1
      %p199 = scmp.eq.s32.totalorder %s30, 1
      %p200 = scmp.ne.s32.totalorder %s195, %s197
      %p201 = scmp.eq.s32.totalorder %s30, 0
      %p202 = por %p200, %p201
      %p203 = scmp.ne.s32.totalorder %s195, %s197
      %p204 = scmp.eq.s32.totalorder %s35, 1
      %p205 = por %p203, %p204
      %p206 = scmp.ne.s32.totalorder %s197, %s198
      %p207 = scmp.eq.s32.totalorder %s35, 0
      %p208 = por %p206, %p207
      %p209 = scmp.ne.s32.totalorder %s197, %s198
      %p210 = scmp.eq.s32.totalorder %s36, 1
      %p211 = por %p209, %p210
      %p213 = scmp.ne.s32.totalorder %s198, %s212
      %p214 = scmp.eq.s32.totalorder %s36, 0
      %p215 = por %p213, %p214
      %s217 = sadd.s32 %s216, 1
      %p220 = scmp.eq.s32.totalorder %s30, 1
      %p221 = scmp.ne.s32.totalorder %s216, %s218
      %p222 = scmp.eq.s32.totalorder %s30, 0
      %p223 = por %p221, %p222
      %p224 = scmp.ne.s32.totalorder %s216, %s218
      %p225 = scmp.eq.s32.totalorder %s35, 1
      %p226 = por %p224, %p225
      %p227 = scmp.ne.s32.totalorder %s218, %s219
      %p228 = scmp.eq.s32.totalorder %s35, 0
      %p229 = por %p227, %p228
      %p230 = scmp.ne.s32.totalorder %s218, %s219
      %p231 = scmp.eq.s32.totalorder %s36, 1
      %p232 = por %p230, %p231
      %p234 = scmp.ne.s32.totalorder %s219, %s233
      %p235 = scmp.eq.s32.totalorder %s36, 0
      %p236 = por %p234, %p235
      %s238 = sadd.s32 %s237, 1
      %p241 = scmp.eq.s32.totalorder %s30, 1
      %p242 = scmp.ne.s32.totalorder %s237, %s239
      %p243 = scmp.eq.s32.totalorder %s30, 0
      %p244 = por %p242, %p243
      %p245 = scmp.ne.s32.totalorder %s237, %s239
      %p246 = scmp.eq.s32.totalorder %s35, 1
      %p247 = por %p245, %p246
      %p248 = scmp.ne.s32.totalorder %s239, %s240
      %p249 = scmp.eq.s32.totalorder %s35, 0
      %p250 = por %p248, %p249
      %p251 = scmp.ne.s32.totalorder %s239, %s240
      %p252 = scmp.eq.s32.totalorder %s36, 1
      %p253 = por %p251, %p252
      %p255 = scmp.ne.s32.totalorder %s240, %s254
      %p256 = scmp.eq.s32.totalorder %s36, 0
      %p257 = por %p255, %p256
      %s259 = sadd.s32 %s258, 1
      %p262 = scmp.eq.s32.totalorder %s30, 1
      %p263 = scmp.ne.s32.totalorder %s258, %s260
      %p264 = scmp.eq.s32.totalorder %s30, 0
      %p265 = por %p263, %p264
      %p266 = scmp.ne.s32.totalorder %s258, %s260
      %p267 = scmp.eq.s32.totalorder %s35, 1
      %p268 = por %p266, %p267
      %p269 = scmp.ne.s32.totalorder %s260, %s261
      %p270 = scmp.eq.s32.totalorder %s35, 0
      %p271 = por %p269, %p270
      %p272 = scmp.ne.s32.totalorder %s260, %s261
      %p273 = scmp.eq.s32.totalorder %s36, 1
      %p274 = por %p272, %p273
      %p276 = scmp.ne.s32.totalorder %s261, %s275
      %p277 = scmp.eq.s32.totalorder %s36, 0
      %p278 = por %p276, %p277
      %s279 = ssub.s32 %s30, %s37
      %p280 = scmp.eq.s32.totalorder %s279, 0
      %s282 = sadd.s32 %s281, 1
      %s283 = scalar_select %p280, %s281, %s282
      %p286 = pneg %p280
      %p287 = scmp.eq.s32.totalorder %s30, 1
      %p288 = por %p286, %p287
      %p289 = scmp.ne.s32.totalorder %s281, %s284
      %p290 = scmp.eq.s32.totalorder %s30, 0
      %p291 = por %p289, %p290
      %p292 = scmp.ne.s32.totalorder %s281, %s284
      %p293 = scmp.eq.s32.totalorder %s35, 1
      %p294 = por %p292, %p293
      %p295 = scmp.ne.s32.totalorder %s284, %s285
      %p296 = scmp.eq.s32.totalorder %s35, 0
      %p297 = por %p295, %p296
      %p298 = scmp.ne.s32.totalorder %s284, %s285
      %p299 = scmp.eq.s32.totalorder %s36, 1
      %p300 = por %p298, %p299
      %p302 = scmp.ne.s32.totalorder %s285, %s301
      %p303 = scmp.eq.s32.totalorder %s36, 0
      %p304 = por %p302, %p303
      %p305 = scmp.le.s32.totalorder 1, %s30
      %p306 = scmp.lt.s32.totalorder %s30, 3
      %p307 = pnand %p305, %p306
      %p308 = pneg %p307
      // Predicated region
      $region9: #{tpu_custom_call.1} parent=5 // pred_check
        _
      $region10: #{tpu_custom_call.1} parent=5 // pred_check_branch
        %310 = sbr.rel (%p307) target = $region12
      $region11: #{tpu_custom_call.1} parent=5 // pred_region
        %s311 = ssub.s32 %s30, 1
        // Predicated region
        $region13: #{tpu_custom_call.1} parent=11 // pred_check
          %p312 = pneg %p103
        $region14: #{tpu_custom_call.1} parent=11 // pred_check_branch
          %314 = sbr.rel (%p312) target = $region16
        $region15: #{tpu_custom_call.1} parent=11 // pred_region
          %s316 = ssub.s32 256, 256
          %317 = vsyncadd [#allocation6], %s316
          %s318 = sshll.u32 [#allocation7], 4
          %s319 = int_to_ptr.vmem [resolvable:$true] %s318
          %324 = dma.hbm_to_vmem [thread:$0]  %s2, 256, %s319, [#allocation6], 64, 64, 4
        $region16: #{tpu_custom_call.1} parent=11 // pred_fallthru
          _
        // Predicated region
        $region17: #{tpu_custom_call.1} parent=11 // pred_check
          %p325 = pneg %p124
        $region18: #{tpu_custom_call.1} parent=11 // pred_check_branch
          %327 = sbr.rel (%p325) target = $region20
        $region19: #{tpu_custom_call.1} parent=11 // pred_region
          %s329 = ssub.s32 16, 16
          %330 = vsyncadd [#allocation9], %s329
          %s332 = sshll.u32 [#allocation8], 4
          %s333 = int_to_ptr.vmem [resolvable:$true] %s332
          %335 = dma.hbm_to_vmem [thread:$0]  %s3, 16, %s333, [#allocation9]
        $region20: #{tpu_custom_call.1} parent=11 // pred_fallthru
          _
        // Predicated region
        $region21: #{tpu_custom_call.1} parent=11 // pred_check
          %p336 = pneg %p145
        $region22: #{tpu_custom_call.1} parent=11 // pred_check_branch
          %338 = sbr.rel (%p336) target = $region24
        $region23: #{tpu_custom_call.1} parent=11 // pred_region
          %s340 = ssub.s32 256, 256
          %341 = vsyncadd [#allocation9], %s340
          %s342 = sshll.u32 [#allocation10], 4
          %s343 = int_to_ptr.vmem [resolvable:$true] %s342
          %348 = dma.hbm_to_vmem [thread:$0]  %s4, 256, %s343, [#allocation9], 64, 64, 4
        $region24: #{tpu_custom_call.1} parent=11 // pred_fallthru
          _
        // Predicated region
        $region25: #{tpu_custom_call.1} parent=11 // pred_check
          %p349 = pneg %p166
        $region26: #{tpu_custom_call.1} parent=11 // pred_check_branch
          %351 = sbr.rel (%p349) target = $region28
        $region27: #{tpu_custom_call.1} parent=11 // pred_region
          %s353 = ssub.s32 256, 256
          %354 = vsyncadd [#allocation12], %s353
          %s355 = sshll.u32 [#allocation11], 4
          %s356 = int_to_ptr.vmem [resolvable:$true] %s355
          %361 = dma.hbm_to_vmem [thread:$0]  %s5, 256, %s356, [#allocation12], 64, 64, 4
        $region28: #{tpu_custom_call.1} parent=11 // pred_fallthru
          _
        // Predicated region
        $region29: #{tpu_custom_call.1} parent=11 // pred_check
          %p362 = pneg %p187
        $region30: #{tpu_custom_call.1} parent=11 // pred_check_branch
          %364 = sbr.rel (%p362) target = $region32
        $region31: #{tpu_custom_call.1} parent=11 // pred_region
          %s366 = ssub.s32 32, 32
          %367 = vsyncadd [#allocation12], %s366
          %s369 = sshll.u32 [#allocation13], 4
          %s370 = int_to_ptr.vmem [resolvable:$true] %s369
          %372 = dma.hbm_to_vmem [thread:$0]  %s6, 32, %s370, [#allocation12]
        $region32: #{tpu_custom_call.1} parent=11 // pred_fallthru
          _
        // Predicated region
        $region33: #{tpu_custom_call.1} parent=11 // pred_check
          %p373 = pneg %p208
        $region34: #{tpu_custom_call.1} parent=11 // pred_check_branch
          %375 = sbr.rel (%p373) target = $region36
        $region35: #{tpu_custom_call.1} parent=11 // pred_region
          %s377 = ssub.s32 256, 256
          %378 = vsyncadd [#allocation15], %s377
          %s379 = sshll.u32 [#allocation14], 4
          %s380 = int_to_ptr.vmem [resolvable:$true] %s379
          %385 = dma.hbm_to_vmem [thread:$0]  %s7, 256, %s380, [#allocation15], 64, 64, 4
        $region36: #{tpu_custom_call.1} parent=11 // pred_fallthru
          _
        // Predicated region
        $region37: #{tpu_custom_call.1} parent=11 // pred_check
          %p386 = pneg %p229
        $region38: #{tpu_custom_call.1} parent=11 // pred_check_branch
          %388 = sbr.rel (%p386) target = $region40
        $region39: #{tpu_custom_call.1} parent=11 // pred_region
          %s390 = ssub.s32 256, 256
          %391 = vsyncadd [#allocation15], %s390
          %s392 = sshll.u32 [#allocation16], 4
          %s393 = int_to_ptr.vmem [resolvable:$true] %s392
          %398 = dma.hbm_to_vmem [thread:$0]  %s8, 256, %s393, [#allocation15], 64, 64, 4
        $region40: #{tpu_custom_call.1} parent=11 // pred_fallthru
          _
        // Predicated region
        $region41: #{tpu_custom_call.1} parent=11 // pred_check
          %p399 = pneg %p250
        $region42: #{tpu_custom_call.1} parent=11 // pred_check_branch
          %401 = sbr.rel (%p399) target = $region44
        $region43: #{tpu_custom_call.1} parent=11 // pred_region
          %s403 = ssub.s32 64, 64
          %404 = vsyncadd [#allocation18], %s403
          %s406 = sshll.u32 [#allocation17], 4
          %s407 = int_to_ptr.vmem [resolvable:$true] %s406
          %409 = dma.hbm_to_vmem [thread:$0]  %s9, 64, %s407, [#allocation18]
        $region44: #{tpu_custom_call.1} parent=11 // pred_fallthru
          _
        // Predicated region
        $region45: #{tpu_custom_call.1} parent=11 // pred_check
          %p410 = pneg %p271
        $region46: #{tpu_custom_call.1} parent=11 // pred_check_branch
          %412 = sbr.rel (%p410) target = $region48
        $region47: #{tpu_custom_call.1} parent=11 // pred_region
          %s414 = ssub.s32 32, 32
          %415 = vsyncadd [#allocation18], %s414
          %s417 = sshll.u32 [#allocation19], 4
          %s418 = int_to_ptr.vmem [resolvable:$true] %s417
          %420 = dma.hbm_to_vmem [thread:$0]  %s10, 32, %s418, [#allocation18]
        $region48: #{tpu_custom_call.1} parent=11 // pred_fallthru
          _
      $region12: #{tpu_custom_call.1} parent=5 // pred_fallthru
        _
      %p421 = scmp.lt.s32.totalorder %s30, 2
      // Predicated region
      $region49: #{tpu_custom_call.1} parent=5 // pred_check
        %p422 = pneg %p421
      $region50: #{tpu_custom_call.1} parent=5 // pred_check_branch
        %424 = sbr.rel (%p422) target = $region52
      $region51: #{tpu_custom_call.1} parent=5 // pred_region
        // Predicated region
        $region53: #{tpu_custom_call.1} parent=51 // pred_check
          %p425 = pneg %p50
        $region54: #{tpu_custom_call.1} parent=51 // pred_check_branch
          %427 = sbr.rel (%p425) target = $region56
        $region55: #{tpu_custom_call.1} parent=51 // pred_region
          %s428 = sand.u32 %s40, 1
          %s429 = scalar_lea.sflag [#allocation3], %s428
          %s430 = sand.u32 %s40, 1
          %s431 = smul.addr %s430, 8
          %s432 = scalar_lea.vmem [#allocation2], %s431
          %s434 = ssub.s32 128, 128
          %435 = vsyncadd %s429, %s434
          %s436 = smul.addr %s30, 128
          %s437 = scalar_lea.hbm %s0, %s436
          %s439 = sshll.u32 %s432, 4
          %s440 = int_to_ptr.vmem [resolvable:$true] %s439
          %442 = dma.hbm_to_vmem [thread:$0]  %s437, 128, %s440, %s429
        $region56: #{tpu_custom_call.1} parent=51 // pred_fallthru
          _
        // Predicated region
        $region57: #{tpu_custom_call.1} parent=51 // pred_check
          %p443 = pneg %p76
        $region58: #{tpu_custom_call.1} parent=51 // pred_check_branch
          %445 = sbr.rel (%p443) target = $region60
        $region59: #{tpu_custom_call.1} parent=51 // pred_region
          %s446 = sand.u32 %s30, 1
          %s447 = scalar_lea.sflag [#allocation6], %s446
          %s448 = sand.u32 %s66, 1
          %s449 = smul.addr %s448, 4
          %s450 = scalar_lea.vmem [#allocation5], %s449
          %s452 = ssub.s32 64, 64
          %453 = vsyncadd %s447, %s452
          %s454 = smul.addr %s30, 64
          %s455 = scalar_lea.hbm %s1, %s454
          %s457 = sshll.u32 %s450, 4
          %s458 = int_to_ptr.vmem [resolvable:$true] %s457
          %460 = dma.hbm_to_vmem [thread:$0]  %s455, 64, %s458, %s447
        $region60: #{tpu_custom_call.1} parent=51 // pred_fallthru
          _
      $region52: #{tpu_custom_call.1} parent=5 // pred_fallthru
        _
      %p461 = scmp.le.s32.totalorder 1, %s30
      %p462 = scmp.lt.s32.totalorder %s30, 3
      %p463 = pnand %p461, %p462
      %p464 = pneg %p463
      // Predicated region
      $region61: #{tpu_custom_call.1} parent=5 // pred_check
        _
      $region62: #{tpu_custom_call.1} parent=5 // pred_check_branch
        %466 = sbr.rel (%p463) target = $region64
      $region63: #{tpu_custom_call.1} parent=5 // pred_region
        %s467 = ssub.s32 %s30, 1
        %s468 = sand.u32 %s43, 1
        %s469 = scalar_lea.sflag [#allocation3], %s468
        %s470 = sand.u32 %s43, 1
        %s471 = smul.addr %s470, 8
        %s472 = scalar_lea.vmem [#allocation2], %s471
        // Predicated region
        $region65: #{tpu_custom_call.1} parent=63 // pred_check
          %p473 = pneg %p56
        $region66: #{tpu_custom_call.1} parent=63 // pred_check_branch
          %475 = sbr.rel (%p473) target = $region68
        $region67: #{tpu_custom_call.1} parent=63 // pred_region
          %476 = dma.done %s469, 128
        $region68: #{tpu_custom_call.1} parent=63 // pred_fallthru
          _
        %s477 = sand.u32 %s35, 1
        %s478 = scalar_lea.sflag [#allocation6], %s477
        %s479 = sand.u32 %s69, 1
        %s480 = smul.addr %s479, 4
        %s481 = scalar_lea.vmem [#allocation5], %s480
        // Predicated region
        $region69: #{tpu_custom_call.1} parent=63 // pred_check
          %p482 = pneg %p82
        $region70: #{tpu_custom_call.1} parent=63 // pred_check_branch
          %484 = sbr.rel (%p482) target = $region72
        $region71: #{tpu_custom_call.1} parent=63 // pred_region
          %485 = dma.done %s478, 64
        $region72: #{tpu_custom_call.1} parent=63 // pred_fallthru
          _
        // Predicated region
        $region73: #{tpu_custom_call.1} parent=63 // pred_check
          %p486 = pneg %p103
        $region74: #{tpu_custom_call.1} parent=63 // pred_check_branch
          %488 = sbr.rel (%p486) target = $region76
        $region75: #{tpu_custom_call.1} parent=63 // pred_region
          %489 = dma.done [#allocation6], 256
        $region76: #{tpu_custom_call.1} parent=63 // pred_fallthru
          _
        // Predicated region
        $region77: #{tpu_custom_call.1} parent=63 // pred_check
          %p490 = pneg %p124
        $region78: #{tpu_custom_call.1} parent=63 // pred_check_branch
          %492 = sbr.rel (%p490) target = $region80
        $region79: #{tpu_custom_call.1} parent=63 // pred_region
          %493 = dma.done [#allocation9], 16
        $region80: #{tpu_custom_call.1} parent=63 // pred_fallthru
          _
        // Predicated region
        $region81: #{tpu_custom_call.1} parent=63 // pred_check
          %p494 = pneg %p145
        $region82: #{tpu_custom_call.1} parent=63 // pred_check_branch
          %496 = sbr.rel (%p494) target = $region84
        $region83: #{tpu_custom_call.1} parent=63 // pred_region
          %497 = dma.done [#allocation9], 256
        $region84: #{tpu_custom_call.1} parent=63 // pred_fallthru
          _
        // Predicated region
        $region85: #{tpu_custom_call.1} parent=63 // pred_check
          %p498 = pneg %p166
        $region86: #{tpu_custom_call.1} parent=63 // pred_check_branch
          %500 = sbr.rel (%p498) target = $region88
        $region87: #{tpu_custom_call.1} parent=63 // pred_region
          %501 = dma.done [#allocation12], 256
        $region88: #{tpu_custom_call.1} parent=63 // pred_fallthru
          _
        // Predicated region
        $region89: #{tpu_custom_call.1} parent=63 // pred_check
          %p502 = pneg %p187
        $region90: #{tpu_custom_call.1} parent=63 // pred_check_branch
          %504 = sbr.rel (%p502) target = $region92
        $region91: #{tpu_custom_call.1} parent=63 // pred_region
          %505 = dma.done [#allocation12], 32
        $region92: #{tpu_custom_call.1} parent=63 // pred_fallthru
          _
        // Predicated region
        $region93: #{tpu_custom_call.1} parent=63 // pred_check
          %p506 = pneg %p208
        $region94: #{tpu_custom_call.1} parent=63 // pred_check_branch
          %508 = sbr.rel (%p506) target = $region96
        $region95: #{tpu_custom_call.1} parent=63 // pred_region
          %509 = dma.done [#allocation15], 256
        $region96: #{tpu_custom_call.1} parent=63 // pred_fallthru
          _
        // Predicated region
        $region97: #{tpu_custom_call.1} parent=63 // pred_check
          %p510 = pneg %p229
        $region98: #{tpu_custom_call.1} parent=63 // pred_check_branch
          %512 = sbr.rel (%p510) target = $region100
        $region99: #{tpu_custom_call.1} parent=63 // pred_region
          %513 = dma.done [#allocation15], 256
        $region100: #{tpu_custom_call.1} parent=63 // pred_fallthru
          _
        // Predicated region
        $region101: #{tpu_custom_call.1} parent=63 // pred_check
          %p514 = pneg %p250
        $region102: #{tpu_custom_call.1} parent=63 // pred_check_branch
          %516 = sbr.rel (%p514) target = $region104
        $region103: #{tpu_custom_call.1} parent=63 // pred_region
          %517 = dma.done [#allocation18], 64
        $region104: #{tpu_custom_call.1} parent=63 // pred_fallthru
          _
        // Predicated region
        $region105: #{tpu_custom_call.1} parent=63 // pred_check
          %p518 = pneg %p271
        $region106: #{tpu_custom_call.1} parent=63 // pred_check_branch
          %520 = sbr.rel (%p518) target = $region108
        $region107: #{tpu_custom_call.1} parent=63 // pred_region
          %521 = dma.done [#allocation18], 32
        $region108: #{tpu_custom_call.1} parent=63 // pred_fallthru
          _
        %s522 = sand.u32 %s43, 1
        %s523 = scalar_lea.sflag [#allocation3], %s522
        %s524 = sand.u32 %s43, 1
        %s525 = smul.addr %s524, 8
        %s526 = scalar_lea.vmem [#allocation2], %s525
        %p527 = pneg %p56
        %p528 = pneg %p53
        %s529 = sand.u32 %s35, 1
        %s530 = scalar_lea.sflag [#allocation6], %s529
        %s531 = sand.u32 %s69, 1
        %s532 = smul.addr %s531, 4
        %s533 = scalar_lea.vmem [#allocation5], %s532
        %p534 = pneg %p82
        %p535 = pneg %p79
        %p536 = pneg %p103
        %p537 = pneg %p100
        %p538 = pneg %p124
        %p539 = pneg %p121
        %p540 = pneg %p145
        %p541 = pneg %p142
        %p542 = pneg %p166
        %p543 = pneg %p163
        %p544 = pneg %p187
        %p545 = pneg %p184
        %p546 = pneg %p208
        %p547 = pneg %p205
        %p548 = pneg %p229
        %p549 = pneg %p226
        %p550 = pneg %p250
        %p551 = pneg %p247
        %p552 = pneg %p271
        %p553 = pneg %p268
        %p554 = pneg %p297
        %p555 = pneg %p294
        %s556 = sand.u32 %s284, 1
        %s557 = scalar_lea.sflag [#allocation4], %s556
        %s558 = sand.u32 %s284, 1
        %s559 = smul.addr %s558, 8
        %s560 = scalar_lea.vmem [#allocation20], %s559
        %v562 = vld [vmem:[#allocation13] sm:$0x1]
        %v563 = vld [vmem:[#allocation13 + $0x1] sm:$0x1]
        %v564 = vld [vmem:[#allocation17] sm:$0x1]
        %v565 = vld [vmem:[#allocation17 + $0x1] sm:$0x1]
        %v566 = vld [vmem:[#allocation17 + $0x2] sm:$0x1]
        %v567 = vld [vmem:[#allocation17 + $0x3] sm:$0x1]
        %v568 = vld [vmem:[%s472] sm:$0xff]
        %v569 = vpack.c.bf16 %v568, %v568
        %v570 = vld [vmem:[%s481] sm:$0xf]
        %v571 = vunpack.c.l.bf16 %v570
        %v572 = vsub.f32 1.0, %v571
        %v573 = vmul.f32 %v572, -10000.0
        %v574 = vld [vmem:[#allocation19] sm:$0x3]
        %v575 = vld [vmem:[#allocation7] sm:$0xf]
        %v576 = vld [vmem:[#allocation7 + $0x4] sm:$0xf]
        %v577 = vld [vmem:[#allocation7 + $0x8] sm:$0xf]
        %v578 = vld [vmem:[#allocation7 + $0xc] sm:$0xf]
        %v579 = vld [vmem:[#allocation8] sm:$0x1]
        %v581 = vlaneseq
        %v582 = vshrl.u32 %v581, 7
        %v583 = vsub.s32 0, %v582
        %v584 = vrot.slane %v579, %v583
        %v590 = vunpack.c.l.b16 %v575
        %v591 = vunpack.c.l.b16 %v576
        %v592 = vunpack.c.l.b16 %v577
        %v593 = vunpack.c.l.b16 %v578
        %v594 = vpack.c.b16 %v591, %v590
        %v595 = vpack.c.b16 %v593, %v592
        %vm598 = vcmask 261120
        %v600 = vsel %vm598, %v569, 0
        %602 = vmatprep.subr.bf16.mxu0 0
        %603 = vmatpush1.bf16.msra.mxu0 %v594
        %604 = vmatprep.subr.bf16.mxu0 0
        %605 = vmatpush1.bf16.msra.mxu0 %v595
        %606 = vmatprep.subr.bf16.mxu0 0
        %607 = vmatpush1.bf16.msra.mxu0 0
        %608 = vmatprep.subr.bf16.mxu0 0
        %609 = vmatpush1.bf16.msra.mxu0 0
        %610 = vmatprep.subr.bf16.mxu0 0
        %611 = vmatpush1.bf16.msra.mxu0 0
        %612 = vmatprep.subr.bf16.mxu0 0
        %613 = vmatpush1.bf16.msra.mxu0 0
        %614 = vmatprep.subr.bf16.mxu0 0
        %615 = vmatpush1.bf16.msra.mxu0 0
        %616 = vmatprep.subr.bf16.mxu0 0
        %617 = vmatpush1.bf16.msra.mxu0 0
        %618 = vmatprep.subr.bf16.mxu0 0
        %619 = vmatpush1.bf16.msra.mxu0 0
        %620 = vmatprep.subr.bf16.mxu0 0
        %621 = vmatpush1.bf16.msra.mxu0 0
        %622 = vmatprep.subr.bf16.mxu0 0
        %623 = vmatpush1.bf16.msra.mxu0 0
        %624 = vmatprep.subr.bf16.mxu0 0
        %625 = vmatpush1.bf16.msra.mxu0 0
        %626 = vmatprep.subr.bf16.mxu0 0
        %627 = vmatpush1.bf16.msra.mxu0 0
        %628 = vmatprep.subr.bf16.mxu0 0
        %629 = vmatpush1.bf16.msra.mxu0 0
        %630 = vmatprep.subr.bf16.mxu0 0
        %631 = vmatpush1.bf16.msra.mxu0 0
        %632 = vmatprep.subr.bf16.mxu0 0
        %633 = vmatpush1.bf16.msra.mxu0 0
        %634 = vmatprep.mubr.bf16.mxu0 0
        %635 = vmatmul.mubr.bf16.gmra.mrb[0].mxu0 %v600
        %v636 = vpop.f32.mrb[0].mxu0
        %v637 = vadd.f32 %v584, %v636
        %v638 = vpop.f32.mrb[0].mxu0
        %v639 = vpop.f32.mrb[0].mxu0
        %v640 = vpop.f32.mrb[0].mxu0
        %641 = vdwg.mxu0
        %v642 = vpack.c.bf16 %v637, %v637
        %v643 = vld [vmem:[#allocation10] sm:$0xf]
        %v644 = vld [vmem:[#allocation10 + $0x4] sm:$0xf]
        %v645 = vld [vmem:[#allocation10 + $0x8] sm:$0xf]
        %v646 = vld [vmem:[#allocation10 + $0xc] sm:$0xf]
        %v647 = vlaneseq
        %v648 = vshrl.u32 %v647, 7
        %v649 = vsub.s32 0, %v648
        %v650 = vrot.slane %v562, %v649
        %v655 = vunpack.c.l.b16 %v643
        %v656 = vunpack.c.l.b16 %v644
        %v657 = vunpack.c.l.b16 %v645
        %v658 = vunpack.c.l.b16 %v646
        %v659 = vpack.c.b16 %v656, %v655
        %v660 = vpack.c.b16 %v658, %v657
        %v664 = vsel %vm598, %v642, 0
        %666 = vmatprep.subr.bf16.mxu0 0
        %667 = vmatpush1.bf16.msra.mxu0 %v659
        %668 = vmatprep.subr.bf16.mxu0 0
        %669 = vmatpush1.bf16.msra.mxu0 %v660
        %670 = vmatprep.subr.bf16.mxu0 0
        %671 = vmatpush1.bf16.msra.mxu0 0
        %672 = vmatprep.subr.bf16.mxu0 0
        %673 = vmatpush1.bf16.msra.mxu0 0
        %674 = vmatprep.subr.bf16.mxu0 0
        %675 = vmatpush1.bf16.msra.mxu0 0
        %676 = vmatprep.subr.bf16.mxu0 0
        %677 = vmatpush1.bf16.msra.mxu0 0
        %678 = vmatprep.subr.bf16.mxu0 0
        %679 = vmatpush1.bf16.msra.mxu0 0
        %680 = vmatprep.subr.bf16.mxu0 0
        %681 = vmatpush1.bf16.msra.mxu0 0
        %682 = vmatprep.subr.bf16.mxu0 0
        %683 = vmatpush1.bf16.msra.mxu0 0
        %684 = vmatprep.subr.bf16.mxu0 0
        %685 = vmatpush1.bf16.msra.mxu0 0
        %686 = vmatprep.subr.bf16.mxu0 0
        %687 = vmatpush1.bf16.msra.mxu0 0
        %688 = vmatprep.subr.bf16.mxu0 0
        %689 = vmatpush1.bf16.msra.mxu0 0
        %690 = vmatprep.subr.bf16.mxu0 0
        %691 = vmatpush1.bf16.msra.mxu0 0
        %692 = vmatprep.subr.bf16.mxu0 0
        %693 = vmatpush1.bf16.msra.mxu0 0
        %694 = vmatprep.subr.bf16.mxu0 0
        %695 = vmatpush1.bf16.msra.mxu0 0
        %696 = vmatprep.subr.bf16.mxu0 0
        %697 = vmatpush1.bf16.msra.mxu0 0
        %698 = vmatprep.mubr.bf16.mxu0 0
        %699 = vmatmul.mubr.bf16.gmra.mrb[0].mxu0 %v664
        %v700 = vpop.f32.mrb[0].mxu0
        %v701 = vadd.f32 %v650, %v700
        %v702 = vpop.f32.mrb[0].mxu0
        %v703 = vpop.f32.mrb[0].mxu0
        %v704 = vpop.f32.mrb[0].mxu0
        %705 = vdwg.mxu0
        %v706 = vmul.f32 %v701, 0.35355338
        %v707 = vadd.f32 %v706, %v573
        %vm708 = vcmask 31744
        %v709 = vsel %vm708, %v707, -inf
        %v710 = vrot.slane %v709, 4
        %v711 = vmax.f32 %v709, %v710
        %v712 = vrot.slane %v711, 2
        %v713 = vmax.f32 %v711, %v712
        %v714 = vrot.slane %v713, 1
        %v715 = vmax.f32 %v713, %v714
        %v716 = vsub.f32 %v707, %v715
        %v717 = vmul.f32 %v716, 1.442695
        %v718 = vpow.pop %v717
        %v719 = vsel %vm708, %v718, 0.0
        %v720 = vrot.slane %v719, 4
        %v721 = vadd.f32 %v719, %v720
        %v722 = vrot.slane %v721, 2
        %v723 = vadd.f32 %v721, %v722
        %v724 = vrot.slane %v723, 1
        %v725 = vadd.f32 %v723, %v724
        %v726 = vrcp.pop %v725
        %v727 = vmul.f32 %v718, %v726
        %v728 = vpack.c.bf16 %v727, %v727
        %v730 = vsel %vm708, %v728, 0
        %vm732 = vcmask 1041408
        %v734 = vsel %vm732, %v574, 0
        %736 = vmatprep.subr.bf16.mxu0 0
        %737 = vmatpush1.bf16.msra.mxu0 %v734
        %738 = vmatprep.subr.bf16.mxu0 0
        %739 = vmatpush1.bf16.msra.mxu0 0
        %740 = vmatprep.subr.bf16.mxu0 0
        %741 = vmatpush1.bf16.msra.mxu0 0
        %742 = vmatprep.subr.bf16.mxu0 0
        %743 = vmatpush1.bf16.msra.mxu0 0
        %744 = vmatprep.subr.bf16.mxu0 0
        %745 = vmatpush1.bf16.msra.mxu0 0
        %746 = vmatprep.subr.bf16.mxu0 0
        %747 = vmatpush1.bf16.msra.mxu0 0
        %748 = vmatprep.subr.bf16.mxu0 0
        %749 = vmatpush1.bf16.msra.mxu0 0
        %750 = vmatprep.subr.bf16.mxu0 0
        %751 = vmatpush1.bf16.msra.mxu0 0
        %752 = vmatprep.subr.bf16.mxu0 0
        %753 = vmatpush1.bf16.msra.mxu0 0
        %754 = vmatprep.subr.bf16.mxu0 0
        %755 = vmatpush1.bf16.msra.mxu0 0
        %756 = vmatprep.subr.bf16.mxu0 0
        %757 = vmatpush1.bf16.msra.mxu0 0
        %758 = vmatprep.subr.bf16.mxu0 0
        %759 = vmatpush1.bf16.msra.mxu0 0
        %760 = vmatprep.subr.bf16.mxu0 0
        %761 = vmatpush1.bf16.msra.mxu0 0
        %762 = vmatprep.subr.bf16.mxu0 0
        %763 = vmatpush1.bf16.msra.mxu0 0
        %764 = vmatprep.subr.bf16.mxu0 0
        %765 = vmatpush1.bf16.msra.mxu0 0
        %766 = vmatprep.subr.bf16.mxu0 0
        %767 = vmatpush1.bf16.msra.mxu0 0
        %768 = vmatprep.mubr.bf16.mxu0 0
        %769 = vmatmul.mubr.bf16.gmra.mrb[0].mxu0 %v730
        %v770 = vpop.f32.mrb[0].mxu0
        %v771 = vadd.f32 0.0, %v770
        %v772 = vpop.f32.mrb[0].mxu0
        %v773 = vpop.f32.mrb[0].mxu0
        %v774 = vpop.f32.mrb[0].mxu0
        %775 = vdwg.mxu0
        %v776 = vmul.f32 %v771, %v637
        %v777 = vsel %vm598, %v776, 0.0
        %v778 = vrot.slane %v777, 4
        %v779 = vadd.f32 %v777, %v778
        %v780 = vrot.slane %v779, 2
        %v781 = vadd.f32 %v779, %v780
        %v782 = vrot.slane %v781, 1
        %v783 = vadd.f32 %v781, %v782
        %785 = vrot.lane.b32.xlu0 %v783, 32
        %v786 = vpop.permute.xlu0 %785
        %v788 = vmul.f32 %v637, %v786
        %v789 = vpack.c.bf16 %v788, %v788
        %v790 = vld [vmem:[#allocation11] sm:$0xf]
        %v791 = vld [vmem:[#allocation11 + $0x4] sm:$0xf]
        %v792 = vld [vmem:[#allocation11 + $0x8] sm:$0xf]
        %v793 = vld [vmem:[#allocation11 + $0xc] sm:$0xf]
        %v794 = vlaneseq
        %v795 = vshrl.u32 %v794, 7
        %v796 = vsub.s32 0, %v795
        %v797 = vrot.slane %v563, %v796
        %799 = vrot.lane.b32.xlu0 %v789, 96
        %v800 = vpop.permute.xlu0 %799
        %v805 = vunpack.c.l.b16 %v790
        %v806 = vunpack.c.l.b16 %v791
        %v807 = vunpack.c.l.b16 %v792
        %v808 = vunpack.c.l.b16 %v793
        %v809 = vpack.c.b16 %v806, %v805
        %v810 = vpack.c.b16 %v808, %v807
        %v814 = vsel %vm598, %v800, 0
        %816 = vmatprep.subr.bf16.mxu0 0
        %817 = vmatpush1.bf16.msra.mxu0 %v809
        %818 = vmatprep.subr.bf16.mxu0 0
        %819 = vmatpush1.bf16.msra.mxu0 %v810
        %820 = vmatprep.subr.bf16.mxu0 0
        %821 = vmatpush1.bf16.msra.mxu0 0
        %822 = vmatprep.subr.bf16.mxu0 0
        %823 = vmatpush1.bf16.msra.mxu0 0
        %824 = vmatprep.subr.bf16.mxu0 0
        %825 = vmatpush1.bf16.msra.mxu0 0
        %826 = vmatprep.subr.bf16.mxu0 0
        %827 = vmatpush1.bf16.msra.mxu0 0
        %828 = vmatprep.subr.bf16.mxu0 0
        %829 = vmatpush1.bf16.msra.mxu0 0
        %830 = vmatprep.subr.bf16.mxu0 0
        %831 = vmatpush1.bf16.msra.mxu0 0
        %832 = vmatprep.subr.bf16.mxu0 0
        %833 = vmatpush1.bf16.msra.mxu0 0
        %834 = vmatprep.subr.bf16.mxu0 0
        %835 = vmatpush1.bf16.msra.mxu0 0
        %836 = vmatprep.subr.bf16.mxu0 0
        %837 = vmatpush1.bf16.msra.mxu0 0
        %838 = vmatprep.subr.bf16.mxu0 0
        %839 = vmatpush1.bf16.msra.mxu0 0
        %840 = vmatprep.subr.bf16.mxu0 0
        %841 = vmatpush1.bf16.msra.mxu0 0
        %842 = vmatprep.subr.bf16.mxu0 0
        %843 = vmatpush1.bf16.msra.mxu0 0
        %844 = vmatprep.subr.bf16.mxu0 0
        %845 = vmatpush1.bf16.msra.mxu0 0
        %846 = vmatprep.subr.bf16.mxu0 0
        %847 = vmatpush1.bf16.msra.mxu0 0
        %848 = vmatprep.mubr.bf16.mxu0 0
        %849 = vmatmul.mubr.bf16.gmra.mrb[0].mxu0 %v814
        %v850 = vpop.f32.mrb[0].mxu0
        %v851 = vadd.f32 %v797, %v850
        %v852 = vpop.f32.mrb[0].mxu0
        %v853 = vpop.f32.mrb[0].mxu0
        %v854 = vpop.f32.mrb[0].mxu0
        %855 = vdwg.mxu0
        %v856 = vmul.f32 %v851, 0.35355338
        %v857 = vadd.f32 %v856, %v573
        %v858 = vsel %vm708, %v857, -inf
        %v859 = vrot.slane %v858, 4
        %v860 = vmax.f32 %v858, %v859
        %v861 = vrot.slane %v860, 2
        %v862 = vmax.f32 %v860, %v861
        %v863 = vrot.slane %v862, 1
        %v864 = vmax.f32 %v862, %v863
        %v865 = vsub.f32 %v857, %v864
        %v866 = vmul.f32 %v865, 1.442695
        %v867 = vpow.pop %v866
        %v868 = vsel %vm708, %v867, 0.0
        %v869 = vrot.slane %v868, 4
        %v870 = vadd.f32 %v868, %v869
        %v871 = vrot.slane %v870, 2
        %v872 = vadd.f32 %v870, %v871
        %v873 = vrot.slane %v872, 1
        %v874 = vadd.f32 %v872, %v873
        %v875 = vrcp.pop %v874
        %v876 = vmul.f32 %v867, %v875
        %v877 = vpack.c.bf16 %v876, %v876
        %v879 = vsel %vm708, %v877, 0
        %881 = vmatprep.subr.bf16.mxu0 0
        %882 = vmatpush1.bf16.msra.mxu0 %v734
        %883 = vmatprep.subr.bf16.mxu0 0
        %884 = vmatpush1.bf16.msra.mxu0 0
        %885 = vmatprep.subr.bf16.mxu0 0
        %886 = vmatpush1.bf16.msra.mxu0 0
        %887 = vmatprep.subr.bf16.mxu0 0
        %888 = vmatpush1.bf16.msra.mxu0 0
        %889 = vmatprep.subr.bf16.mxu0 0
        %890 = vmatpush1.bf16.msra.mxu0 0
        %891 = vmatprep.subr.bf16.mxu0 0
        %892 = vmatpush1.bf16.msra.mxu0 0
        %893 = vmatprep.subr.bf16.mxu0 0
        %894 = vmatpush1.bf16.msra.mxu0 0
        %895 = vmatprep.subr.bf16.mxu0 0
        %896 = vmatpush1.bf16.msra.mxu0 0
        %897 = vmatprep.subr.bf16.mxu0 0
        %898 = vmatpush1.bf16.msra.mxu0 0
        %899 = vmatprep.subr.bf16.mxu0 0
        %900 = vmatpush1.bf16.msra.mxu0 0
        %901 = vmatprep.subr.bf16.mxu0 0
        %902 = vmatpush1.bf16.msra.mxu0 0
        %903 = vmatprep.subr.bf16.mxu0 0
        %904 = vmatpush1.bf16.msra.mxu0 0
        %905 = vmatprep.subr.bf16.mxu0 0
        %906 = vmatpush1.bf16.msra.mxu0 0
        %907 = vmatprep.subr.bf16.mxu0 0
        %908 = vmatpush1.bf16.msra.mxu0 0
        %909 = vmatprep.subr.bf16.mxu0 0
        %910 = vmatpush1.bf16.msra.mxu0 0
        %911 = vmatprep.subr.bf16.mxu0 0
        %912 = vmatpush1.bf16.msra.mxu0 0
        %913 = vmatprep.mubr.bf16.mxu0 0
        %914 = vmatmul.mubr.bf16.gmra.mrb[0].mxu0 %v879
        %v915 = vpop.f32.mrb[0].mxu0
        %v916 = vadd.f32 0.0, %v915
        %v917 = vpop.f32.mrb[0].mxu0
        %v918 = vpop.f32.mrb[0].mxu0
        %v919 = vpop.f32.mrb[0].mxu0
        %920 = vdwg.mxu0
        %922 = vrot.lane.b32.xlu0 %v788, 96
        %v923 = vpop.permute.xlu0 %922
        %v925 = vmul.f32 %v916, %v923
        %v926 = vsel %vm598, %v925, 0.0
        %v927 = vrot.slane %v926, 4
        %v928 = vadd.f32 %v926, %v927
        %v929 = vrot.slane %v928, 2
        %v930 = vadd.f32 %v928, %v929
        %v931 = vrot.slane %v930, 1
        %v932 = vadd.f32 %v930, %v931
        %v933 = vmul.f32 %v932, %v637
        %v934 = vpack.c.bf16 %v933, %v933
        %v935 = vld [vmem:[#allocation14] sm:$0xf]
        %v936 = vld [vmem:[#allocation14 + $0x4] sm:$0xf]
        %v937 = vld [vmem:[#allocation14 + $0x8] sm:$0xf]
        %v938 = vld [vmem:[#allocation14 + $0xc] sm:$0xf]
        %v939 = vlaneseq
        %v940 = vshrl.u32 %v939, 7
        %v941 = vsub.s32 0, %v940
        %v942 = vrot.slane %v564, %v941
        %v947 = vunpack.c.l.b16 %v935
        %v948 = vunpack.c.l.b16 %v936
        %v949 = vunpack.c.l.b16 %v937
        %v950 = vunpack.c.l.b16 %v938
        %v951 = vpack.c.b16 %v948, %v947
        %v952 = vpack.c.b16 %v950, %v949
        %v956 = vsel %vm598, %v934, 0
        %958 = vmatprep.subr.bf16.mxu0 0
        %959 = vmatpush1.bf16.msra.mxu0 %v951
        %960 = vmatprep.subr.bf16.mxu0 0
        %961 = vmatpush1.bf16.msra.mxu0 %v952
        %962 = vmatprep.subr.bf16.mxu0 0
        %963 = vmatpush1.bf16.msra.mxu0 0
        %964 = vmatprep.subr.bf16.mxu0 0
        %965 = vmatpush1.bf16.msra.mxu0 0
        %966 = vmatprep.subr.bf16.mxu0 0
        %967 = vmatpush1.bf16.msra.mxu0 0
        %968 = vmatprep.subr.bf16.mxu0 0
        %969 = vmatpush1.bf16.msra.mxu0 0
        %970 = vmatprep.subr.bf16.mxu0 0
        %971 = vmatpush1.bf16.msra.mxu0 0
        %972 = vmatprep.subr.bf16.mxu0 0
        %973 = vmatpush1.bf16.msra.mxu0 0
        %974 = vmatprep.subr.bf16.mxu0 0
        %975 = vmatpush1.bf16.msra.mxu0 0
        %976 = vmatprep.subr.bf16.mxu0 0
        %977 = vmatpush1.bf16.msra.mxu0 0
        %978 = vmatprep.subr.bf16.mxu0 0
        %979 = vmatpush1.bf16.msra.mxu0 0
        %980 = vmatprep.subr.bf16.mxu0 0
        %981 = vmatpush1.bf16.msra.mxu0 0
        %982 = vmatprep.subr.bf16.mxu0 0
        %983 = vmatpush1.bf16.msra.mxu0 0
        %984 = vmatprep.subr.bf16.mxu0 0
        %985 = vmatpush1.bf16.msra.mxu0 0
        %986 = vmatprep.subr.bf16.mxu0 0
        %987 = vmatpush1.bf16.msra.mxu0 0
        %988 = vmatprep.subr.bf16.mxu0 0
        %989 = vmatpush1.bf16.msra.mxu0 0
        %990 = vmatprep.mubr.bf16.mxu0 0
        %991 = vmatmul.mubr.bf16.gmra.mrb[0].mxu0 %v956
        %v992 = vpop.f32.mrb[0].mxu0
        %v993 = vadd.f32 %v942, %v992
        %v994 = vpop.f32.mrb[0].mxu0
        %v995 = vpop.f32.mrb[0].mxu0
        %v996 = vpop.f32.mrb[0].mxu0
        %997 = vdwg.mxu0
        %v998 = vadd.f32 %v993, %v637
        %v999 = vpack.c.bf16 %v998, %v998
        %v1000 = vld [vmem:[#allocation16] sm:$0xf]
        %v1001 = vld [vmem:[#allocation16 + $0x4] sm:$0xf]
        %v1002 = vld [vmem:[#allocation16 + $0x8] sm:$0xf]
        %v1003 = vld [vmem:[#allocation16 + $0xc] sm:$0xf]
        %v1004 = vlaneseq
        %v1005 = vshrl.u32 %v1004, 7
        %v1006 = vsub.s32 0, %v1005
        %v1007 = vrot.slane %v565, %v1006
        %v1012 = vunpack.c.l.b16 %v1000
        %v1013 = vunpack.c.l.b16 %v1001
        %v1014 = vunpack.c.l.b16 %v1002
        %v1015 = vunpack.c.l.b16 %v1003
        %v1016 = vpack.c.b16 %v1013, %v1012
        %v1017 = vpack.c.b16 %v1015, %v1014
        %v1021 = vsel %vm598, %v999, 0
        %1023 = vmatprep.subr.bf16.mxu0 0
        %1024 = vmatpush1.bf16.msra.mxu0 %v1016
        %1025 = vmatprep.subr.bf16.mxu0 0
        %1026 = vmatpush1.bf16.msra.mxu0 %v1017
        %1027 = vmatprep.subr.bf16.mxu0 0
        %1028 = vmatpush1.bf16.msra.mxu0 0
        %1029 = vmatprep.subr.bf16.mxu0 0
        %1030 = vmatpush1.bf16.msra.mxu0 0
        %1031 = vmatprep.subr.bf16.mxu0 0
        %1032 = vmatpush1.bf16.msra.mxu0 0
        %1033 = vmatprep.subr.bf16.mxu0 0
        %1034 = vmatpush1.bf16.msra.mxu0 0
        %1035 = vmatprep.subr.bf16.mxu0 0
        %1036 = vmatpush1.bf16.msra.mxu0 0
        %1037 = vmatprep.subr.bf16.mxu0 0
        %1038 = vmatpush1.bf16.msra.mxu0 0
        %1039 = vmatprep.subr.bf16.mxu0 0
        %1040 = vmatpush1.bf16.msra.mxu0 0
        %1041 = vmatprep.subr.bf16.mxu0 0
        %1042 = vmatpush1.bf16.msra.mxu0 0
        %1043 = vmatprep.subr.bf16.mxu0 0
        %1044 = vmatpush1.bf16.msra.mxu0 0
        %1045 = vmatprep.subr.bf16.mxu0 0
        %1046 = vmatpush1.bf16.msra.mxu0 0
        %1047 = vmatprep.subr.bf16.mxu0 0
        %1048 = vmatpush1.bf16.msra.mxu0 0
        %1049 = vmatprep.subr.bf16.mxu0 0
        %1050 = vmatpush1.bf16.msra.mxu0 0
        %1051 = vmatprep.subr.bf16.mxu0 0
        %1052 = vmatpush1.bf16.msra.mxu0 0
        %1053 = vmatprep.subr.bf16.mxu0 0
        %1054 = vmatpush1.bf16.msra.mxu0 0
        %1055 = vmatprep.mubr.bf16.mxu0 0
        %1056 = vmatmul.mubr.bf16.gmra.mrb[0].mxu0 %v1021
        %v1057 = vpop.f32.mrb[0].mxu0
        %v1058 = vadd.f32 %v1007, %v1057
        %v1059 = vpop.f32.mrb[0].mxu0
        %v1060 = vpop.f32.mrb[0].mxu0
        %v1061 = vpop.f32.mrb[0].mxu0
        %1062 = vdwg.mxu0
        %v1063 = vadd.f32 %v1058, %v568
        %v1064 = vsel %vm598, %v1063, 0.0
        %1065 = vadd.xlane.f32.xlu0 %v1064
        %v1066 = vpop.xlane.xlu0 %1065
        %v1067 = vrcp.pop 32.0
        %v1068 = vmul.f32 %v1066, %v1067
        %v1069 = vsub.f32 %v1063, %v1068
        %v1070 = vmul.f32 %v1069, %v1069
        %v1071 = vsel %vm598, %v1070, 0.0
        %1072 = vadd.xlane.f32.xlu0 %v1071
        %v1073 = vpop.xlane.xlu0 %1072
        %v1074 = vmul.f32 %v1073, %v1067
        %v1075 = vadd.f32 %v1074, 1e-12
        %v1076 = vrsqrt.pop %v1075
        %v1077 = vmul.f32 %v1069, %v1076
        %v1078 = vlaneseq
        %v1079 = vshrl.u32 %v1078, 7
        %v1080 = vsub.s32 0, %v1079
        %v1081 = vrot.slane %v566, %v1080
        %v1082 = vmul.f32 %v1077, %v1081
        %v1083 = vlaneseq
        %v1084 = vshrl.u32 %v1083, 7
        %v1085 = vsub.s32 0, %v1084
        %v1086 = vrot.slane %v567, %v1085
        %v1087 = vadd.f32 %v1082, %v1086
        %1088 = vst.msk [vmem:[%s560] sm:$0xff] %vm598, %v1087
        %s1089 = sand.u32 %s284, 1
        %s1090 = scalar_lea.sflag [#allocation4], %s1089
        %s1091 = sand.u32 %s284, 1
        %s1092 = smul.addr %s1091, 8
        %s1093 = scalar_lea.vmem [#allocation20], %s1092
        // Predicated region
        $region109: #{tpu_custom_call.1} parent=63 // pred_check
          %p1094 = pneg %p294
        $region110: #{tpu_custom_call.1} parent=63 // pred_check_branch
          %1096 = sbr.rel (%p1094) target = $region112
        $region111: #{tpu_custom_call.1} parent=63 // pred_region
          %s1098 = ssub.s32 128, 128
          %1099 = vsyncadd %s1090, %s1098
          %s1100 = smul.addr %s35, 128
          %s1101 = scalar_lea.hbm %s11, %s1100
          %s1103 = sshll.u32 %s1093, 4
          %s1104 = int_to_ptr.vmem [resolvable:$true] %s1103
          %1106 = dma.vmem_to_hbm [thread:$0]  %s1104, 128, %s1101, %s1090
        $region112: #{tpu_custom_call.1} parent=63 // pred_fallthru
          _
      $region64: #{tpu_custom_call.1} parent=5 // pred_fallthru
        _
      %p1107 = scmp.le.s32.totalorder 2, %s30
      // Predicated region
      $region113: #{tpu_custom_call.1} parent=5 // pred_check
        %p1108 = pneg %p1107
      $region114: #{tpu_custom_call.1} parent=5 // pred_check_branch
        %1110 = sbr.rel (%p1108) target = $region116
      $region115: #{tpu_custom_call.1} parent=5 // pred_region
        %s1111 = ssub.s32 %s30, 2
        // Predicated region
        $region117: #{tpu_custom_call.1} parent=115 // pred_check
          %p1112 = pneg %p300
        $region118: #{tpu_custom_call.1} parent=115 // pred_check_branch
          %1114 = sbr.rel (%p1112) target = $region120
        $region119: #{tpu_custom_call.1} parent=115 // pred_region
          %s1115 = sand.u32 %s285, 1
          %s1116 = scalar_lea.sflag [#allocation4], %s1115
          %s1117 = sand.u32 %s285, 1
          %s1118 = smul.addr %s1117, 8
          %s1119 = scalar_lea.vmem [#allocation20], %s1118
          %1120 = dma.done %s1116, 128
        $region120: #{tpu_custom_call.1} parent=115 // pred_fallthru
          _
      $region116: #{tpu_custom_call.1} parent=5 // pred_fallthru
        _
    $region6: #{tpu_custom_call.1} parent=1 // loop_footer
      %s34 = sadd.s32 1, %s30
    $region7: #{tpu_custom_call.1} parent=1 // loop_footer_branch
      %29 = sbr.rel target = $region3
    $region8: #{tpu_custom_call.1} parent=1 // loop_exit
      _
    %1121 = vsyncpa [#allocation3], 1
    %s1122 = scalar_lea.sflag [#allocation3], 1
    %1123 = vsyncpa %s1122, 1
    %1124 = vsyncpa [#allocation6], 1
    %s1125 = scalar_lea.sflag [#allocation6], 1
    %1126 = vsyncpa %s1125, 1
    %1127 = vsyncpa [#allocation9], 1
    %1128 = vsyncpa [#allocation12], 1
    %1129 = vsyncpa [#allocation15], 1
    %1130 = vsyncpa [#allocation18], 1
    %1131 = vsyncpa [#allocation4], 1
    %s1132 = scalar_lea.sflag [#allocation4], 1
    %1133 = vsyncpa %s1132, 1

</llo_original>
